<compile_context>
chip_gen: v7x
topology: tpu7x:2x2x1
jax: 0.10.0
libtpu: 0.0.40
codegen_flags: <defaults>
</compile_context>

<pallas_src>
import jax
import jax.numpy as jnp
from jax.experimental import pallas as pl
from jax.experimental.pallas import tpu as pltpu


def _round_up(x, m):
    return ((x + m - 1) // m) * m


# ---------------------------------------------------------------------------
# Trace-time parameter pre-transforms (tiny, once per call)
# ---------------------------------------------------------------------------
def _fold_bn_into_linear1(w1, b1, bn):
    """Eval-mode BN(num_features=1) is x*scale + shift; fold it into the first linear."""
    scale, shift = bn[0], bn[1]
    w1f = (w1 * scale).astype(jnp.float32)
    b1f = (b1 + shift * jnp.sum(w1, axis=0, keepdims=True)).astype(jnp.float32)
    return w1f, b1f


def _kron(pack, w):
    """Block-diagonal expansion so `pack` packed rows share one matmul."""
    w = w.astype(jnp.float32)
    if pack == 1:
        return w
    return jnp.kron(jnp.eye(pack, dtype=jnp.float32), w)


def _tile_bias(pack, b):
    return jnp.tile(b.astype(jnp.float32), (1, pack))


def _prepare_static(p, pack, mxu_dtype):
    w1f, b1f = _fold_bn_into_linear1(p["w1"], p["b1"], p["bn"])
    identity = "wr" not in p          # residual_conn is Identity (S == C)
    if identity:
        ws = _kron(pack, w1f)                                          # (pack*S, pack*H)
        bs = _tile_bias(pack, b1f)                                     # (1, pack*H)
        bs2 = _tile_bias(pack, p["b2"])                                # (1, pack*C)
    else:
        ws = jnp.concatenate([_kron(pack, w1f), _kron(pack, p["wr"])], axis=1)
        bs = jnp.concatenate([_tile_bias(pack, b1f),
                              _tile_bias(pack, p["b2"] + p["br"])], axis=1)
        bs2 = None
    return dict(identity=identity,
                ws=ws.astype(mxu_dtype), bs=bs, bs2=bs2,
                w2=_kron(pack, p["w2"]).astype(mxu_dtype))


def _prepare_dynamic(p, pack, c_in, mxu_dtype):
    assert "wr" in p, "dynamic block always has a Linear residual (2C != C)"
    w1f, b1f = _fold_bn_into_linear1(p["w1"], p["b1"], p["bn"])        # (2C, H)
    wdx = jnp.concatenate([_kron(pack, w1f[:c_in]), _kron(pack, p["wr"][:c_in])], axis=1)
    wds = jnp.concatenate([_kron(pack, w1f[c_in:]), _kron(pack, p["wr"][c_in:])], axis=1)
    bd = jnp.concatenate([_tile_bias(pack, b1f),
                          _tile_bias(pack, p["b2"] + p["br"])], axis=1)
    return dict(wdx=wdx.astype(mxu_dtype), wds=wds.astype(mxu_dtype), bd=bd,
                w2=_kron(pack, p["w2"]).astype(mxu_dtype))


# ---------------------------------------------------------------------------
# Fused kernel builder: fmix_static -> (virtual concat) -> fmix_dynamic
# ---------------------------------------------------------------------------
def _build_kernel(hp_s, hp_d, static_identity, mxu_dtype):
    f32 = jnp.float32

    def _dynamic_block(x_ref, s_mix, wdx_ref, wds_ref, bd_ref, w2d_ref, o_ref):
        # concat([x, s_mix]) @ [w1d | wrd]  ==  x @ Wdx + s_mix @ Wds   (row-split weights)
        t_d = (jnp.dot(x_ref[...], wdx_ref[...], preferred_element_type=f32)
               + jnp.dot(s_mix.astype(mxu_dtype), wds_ref[...],
                         preferred_element_type=f32)
               + bd_ref[...])
        hd = jnp.maximum(t_d[:, :hp_d], 0.0)
        out = (jnp.dot(hd.astype(mxu_dtype), w2d_ref[...],
                       preferred_element_type=f32)
               + t_d[:, hp_d:])                       # residual + (b2+br), pre-packed
        o_ref[...] = out.astype(o_ref.dtype)

    if static_identity:
        def kernel(x_ref, s_ref, ws_ref, bs_ref, bs2_ref, w2s_ref,
                   wdx_ref, wds_ref, bd_ref, w2d_ref, o_ref):
            s = s_ref[...]
            hs = jnp.maximum(
                jnp.dot(s, ws_ref[...], preferred_element_type=f32) + bs_ref[...], 0.0)
            s_mix = (jnp.dot(hs.astype(mxu_dtype), w2s_ref[...],
                             preferred_element_type=f32)
                     + bs2_ref[...] + s.astype(f32))  # Identity residual: add raw input
            _dynamic_block(x_ref, s_mix, wdx_ref, wds_ref, bd_ref, w2d_ref, o_ref)
    else:
        def kernel(x_ref, s_ref, ws_ref, bs_ref, w2s_ref,
                   wdx_ref, wds_ref, bd_ref, w2d_ref, o_ref):
            s = s_ref[...]
            t_s = jnp.dot(s, ws_ref[...], preferred_element_type=f32) + bs_ref[...]
            hs = jnp.maximum(t_s[:, :hp_s], 0.0)
            s_mix = (jnp.dot(hs.astype(mxu_dtype), w2s_ref[...],
                             preferred_element_type=f32)
                     + t_s[:, hp_s:])                 # residual + (b2+br), pre-packed
            _dynamic_block(x_ref, s_mix, wdx_ref, wds_ref, bd_ref, w2d_ref, o_ref)

    return kernel


# ---------------------------------------------------------------------------
# Wrapper: full _FeatMixConditional forward in a single pallas_call
# ---------------------------------------------------------------------------
def feat_mix_conditional(X, static, params_static, params_dyn, *,
                         tile_rows=8192, cast_to_bf16=False):
    B, L, C = X.shape
    S = static.shape[-1]
    N = B * L

    # Row-group packing: `pack` consecutive rows side-by-side on the lane axis so the
    # row-streamed blocks are lane-dense (pack*C == 128 when C divides 128).
    pack = min(128 // C, 32) if 128 % C == 0 else 1
    mxu_dtype = jnp.bfloat16 if cast_to_bf16 else jnp.float32

    x2d = X.reshape(N, C)
    s2d = static.reshape(N, S)
    Np = _round_up(N, pack)
    if Np != N:
        # TODO(synk): this pad is a full extra copy of the inputs; only hit when
        #             B*L is not a multiple of `pack` (rare for TSmixer shapes).
        x2d = jnp.pad(x2d, ((0, Np - N), (0, 0)))
        s2d = jnp.pad(s2d, ((0, Np - N), (0, 0)))
    Ng = Np // pack
    xg = x2d.reshape(Ng, pack * C).astype(mxu_dtype)   # free row-major reshape
    sg = s2d.reshape(Ng, pack * S).astype(mxu_dtype)

    ps = _prepare_static(params_static, pack, mxu_dtype)
    pd = _prepare_dynamic(params_dyn, pack, C, mxu_dtype)
    hp_s = pack * params_static["w1"].shape[1]
    hp_d = pack * params_dyn["w1"].shape[1]

    # Row-group tiling; ragged Ng handled by Pallas (cdiv grid + masked boundary block),
    # not by wrapper-side padding.  Per-grid-step overhead ~0.35us -> big tiles.
    tg_max = max(8, ((max(int(tile_rows), pack) // pack) // 8) * 8)
    tg = Ng if Ng <= tg_max else tg_max
    grid = (pl.cdiv(Ng, tg),)

    def _resident(arr):                       # constant-index (weight/bias) operand
        nd = arr.ndim
        return pl.BlockSpec(arr.shape, lambda i, nd=nd: (0,) * nd)

    def _rows(width):                         # row-streamed operand
        return pl.BlockSpec((tg, width), lambda i: (i, 0))

    weights = [ps["ws"], ps["bs"]]
    if ps["identity"]:
        weights.append(ps["bs2"])
    weights += [ps["w2"], pd["wdx"], pd["wds"], pd["bd"], pd["w2"]]

    kernel = _build_kernel(hp_s=hp_s, hp_d=hp_d,
                           static_identity=ps["identity"], mxu_dtype=mxu_dtype)

    outg = pl.pallas_call(
        kernel,
        out_shape=jax.ShapeDtypeStruct((Ng, pack * C), X.dtype),
        grid=grid,
        in_specs=[_rows(pack * C), _rows(pack * S)] + [_resident(w) for w in weights],
        out_specs=pl.BlockSpec((tg, pack * C), lambda i: (i, 0)),
        compiler_params=pltpu.CompilerParams(
            dimension_semantics=("parallel",),          # megacore-shardable on v7x
            vmem_limit_bytes=32 * 1024 * 1024),         # generous headroom on v5e/v6e/v7x
    )(xg, sg, *weights)

    out2d = outg.reshape(Np, C)                         # free row-major reshape
    if Np != N:
        out2d = out2d[:N]
    return out2d.reshape(B, L, C)


# ---------------------------------------------------------------------------
# Deterministic parameter init (mirrors __init__: kaiming_normal linears,
# BatchNorm2d(num_features=1) running stats / affine).
# ---------------------------------------------------------------------------
def init_feature_mixing_params(key, c_in, hidden, c_out, *, eps=1e-5,
                               gamma=1.0, beta=0.0, run_mean=0.0, run_var=1.0):
    ks = jax.random.split(key, 6)

    def kaiming(k, fan_in, shape):
        std = (2.0 / fan_in) ** 0.5
        return (std * jax.random.normal(k, shape)).astype(jnp.float32)

    p = {
        "w1": kaiming(ks[0], c_in, (c_in, hidden)),
        "b1": (0.01 * jax.random.normal(ks[1], (1, hidden))).astype(jnp.float32),
        "w2": kaiming(ks[2], hidden, (hidden, c_out)),
        "b2": (0.01 * jax.random.normal(ks[3], (1, c_out))).astype(jnp.float32),
    }
    if c_out != c_in:  # residual_conn is a Linear(in -> out) only when shapes differ
        p["wr"] = kaiming(ks[4], c_in, (c_in, c_out))
        p["br"] = (0.01 * jax.random.normal(ks[5], (1, c_out))).astype(jnp.float32)

    scale = gamma / (run_var + eps) ** 0.5
    shift = beta - run_mean * scale
    p["bn"] = jnp.array([scale, shift], dtype=jnp.float32)
    return p


# ---------------------------------------------------------------------------
# Pure-JAX reference (unfused, mirrors the PyTorch eval-mode forward)
# ---------------------------------------------------------------------------
def _ref_feature_mixing(x, p):
    y = x * p["bn"][0] + p["bn"][1]
    h = jnp.maximum(y @ p["w1"] + p["b1"], 0.0)
    z = h @ p["w2"] + p["b2"]
    r = (x @ p["wr"] + p["br"]) if "wr" in p else x
    return z + r


def _ref_forward(X, static, ps, pd):
    B, L, C = X.shape
    x2d = X.reshape(B * L, C)
    s2d = static.reshape(B * L, static.shape[-1])
    s_mix = _ref_feature_mixing(s2d, ps)
    y = jnp.concatenate([x2d, s_mix], axis=-1)
    return _ref_feature_mixing(y, pd).reshape(B, L, C)


if __name__ == "__main__":
    B, L = 2, 88          # N = 176 rows -> 11 packed rows (pack=16)
    C = 8                 # in_features (time-series features)
    S = 4                 # static_features
    H = 32                # hidden_layer_size

    key = jax.random.PRNGKey(0)
    k_x, k_s, k_s2, k_ps, k_ps2, k_pd = jax.random.split(key, 6)

    X = jax.random.normal(k_x, (B, L, C), dtype=jnp.float32)
    static = jax.random.normal(k_s, (B, L, S), dtype=jnp.float32)

    # Non-trivial BN running stats so the wrapper-side BN fold is actually tested.
    params_static = init_feature_mixing_params(
        k_ps, S, H, C, gamma=1.1, beta=0.05, run_mean=0.2, run_var=1.3)
    params_dyn = init_feature_mixing_params(
        k_pd, 2 * C, H, C, gamma=0.9, beta=-0.1, run_mean=-0.15, run_var=0.8)

    ref = _ref_forward(X, static, params_static, params_dyn)

    # --- f32 path; small tile so the 1-D grid has 2 steps and a ragged last block ---
    out = feat_mix_conditional(X, static, params_static, params_dyn, tile_rows=128)
    out = jax.block_until_ready(out)
    assert out.shape == (B, L, C)
    assert jnp.allclose(out, ref, atol=1e-4, rtol=1e-4), "f32 kernel mismatch vs reference"

    # --- bf16 streamed operands (f32 accumulation kept in-kernel), default big tile ---
    out_bf16 = feat_mix_conditional(X, static, params_static, params_dyn,
                                    cast_to_bf16=True)
    out_bf16 = jax.block_until_ready(out_bf16)
    assert jnp.allclose(out_bf16, ref, atol=2e-1, rtol=5e-2), "bf16 kernel too far from reference"

    # --- static_features == in_features exercises the Identity-residual fast path ---
    static_sq = jax.random.normal(k_s2, (B, L, C), dtype=jnp.float32)
    params_static_id = init_feature_mixing_params(
        k_ps2, C, H, C, gamma=1.05, beta=0.02, run_mean=0.1, run_var=1.2)
    out_id = feat_mix_conditional(X, static_sq, params_static_id, params_dyn)
    out_id = jax.block_until_ready(out_id)
    ref_id = _ref_forward(X, static_sq, params_static_id, params_dyn)
    assert jnp.allclose(out_id, ref_id, atol=1e-4, rtol=1e-4), "identity-residual path mismatch"

    print("KERNEL_OK")
</pallas_src>

<mosaic_0001>
module attributes {stable_mosaic.version = 11 : i64} {
  func.func @kernel(%arg0: i32, %arg1: memref<8x128xf32, #tpu.memory_space<vmem>>, %arg2: memref<8x64xf32, #tpu.memory_space<vmem>>, %arg3: memref<64x640xf32, #tpu.memory_space<vmem>>, %arg4: memref<1x640xf32, #tpu.memory_space<vmem>>, %arg5: memref<512x128xf32, #tpu.memory_space<vmem>>, %arg6: memref<128x640xf32, #tpu.memory_space<vmem>>, %arg7: memref<128x640xf32, #tpu.memory_space<vmem>>, %arg8: memref<1x640xf32, #tpu.memory_space<vmem>>, %arg9: memref<512x128xf32, #tpu.memory_space<vmem>>, %arg10: memref<8x128xf32, #tpu.memory_space<vmem>>) attributes {dimension_semantics = [#tpu.dimension_semantics<parallel>], iteration_bounds = array<i64: 2>, scalar_prefetch = 0 : i64, scratch_operands = 0 : i64, tpu.core_type = #tpu.core_type<tc>, window_params = [{transform_indices = @transform_0, window_bounds = array<i64: 8, 128>}, {transform_indices = @transform_1, window_bounds = array<i64: 8, 64>}, {pipeline_mode = #tpu.pipeline_mode<synchronous>, transform_indices = @transform_2, window_bounds = array<i64: 64, 640>}, {pipeline_mode = #tpu.pipeline_mode<synchronous>, transform_indices = @transform_3, window_bounds = array<i64: 1, 640>}, {pipeline_mode = #tpu.pipeline_mode<synchronous>, transform_indices = @transform_4, window_bounds = array<i64: 512, 128>}, {pipeline_mode = #tpu.pipeline_mode<synchronous>, transform_indices = @transform_5, window_bounds = array<i64: 128, 640>}, {pipeline_mode = #tpu.pipeline_mode<synchronous>, transform_indices = @transform_6, window_bounds = array<i64: 128, 640>}, {pipeline_mode = #tpu.pipeline_mode<synchronous>, transform_indices = @transform_7, window_bounds = array<i64: 1, 640>}, {pipeline_mode = #tpu.pipeline_mode<synchronous>, transform_indices = @transform_8, window_bounds = array<i64: 512, 128>}, {transform_indices = @transform_9, window_bounds = array<i64: 8, 128>}]} {
    %c0 = arith.constant 0 : index
    %c0_0 = arith.constant 0 : index
    %0 = vector.load %arg2[%c0, %c0_0] : memref<8x64xf32, #tpu.memory_space<vmem>>, vector<8x64xf32>
    %c0_1 = arith.constant 0 : index
    %c0_2 = arith.constant 0 : index
    %1 = vector.load %arg3[%c0_1, %c0_2] : memref<64x640xf32, #tpu.memory_space<vmem>>, vector<64x640xf32>
    %cst = arith.constant dense<0.000000e+00> : vector<8x640xf32>
    %2 = tpu.matmul %0, %1, %cst {dimension_numbers = #tpu.dot_dimension_numbers<[1], [0], [0], [1], [0, 0, 1, 1], [], []>} : vector<8x64xf32>, vector<64x640xf32>, vector<8x640xf32> -> vector<8x640xf32>
    %c0_3 = arith.constant 0 : index
    %c0_4 = arith.constant 0 : index
    %3 = vector.load %arg4[%c0_3, %c0_4] : memref<1x640xf32, #tpu.memory_space<vmem>>, vector<1x640xf32>
    %4 = vector.broadcast %3 : vector<1x640xf32> to vector<8x640xf32>
    %5 = arith.addf %2, %4 : vector<8x640xf32>
    %6 = vector.extract_strided_slice %5 {offsets = [0, 0], sizes = [8, 512], strides = [1, 1]} : vector<8x640xf32> to vector<8x512xf32>
    %cst_5 = arith.constant 0.000000e+00 : f32
    %7 = vector.broadcast %cst_5 : f32 to vector<8x512xf32>
    %8 = arith.maximumf %6, %7 : vector<8x512xf32>
    %c0_6 = arith.constant 0 : index
    %c0_7 = arith.constant 0 : index
    %9 = vector.load %arg5[%c0_6, %c0_7] : memref<512x128xf32, #tpu.memory_space<vmem>>, vector<512x128xf32>
    %cst_8 = arith.constant dense<0.000000e+00> : vector<8x128xf32>
    %10 = tpu.matmul %8, %9, %cst_8 {dimension_numbers = #tpu.dot_dimension_numbers<[1], [0], [0], [1], [0, 0, 1, 1], [], []>} : vector<8x512xf32>, vector<512x128xf32>, vector<8x128xf32> -> vector<8x128xf32>
    %11 = vector.extract_strided_slice %5 {offsets = [0, 512], sizes = [8, 128], strides = [1, 1]} : vector<8x640xf32> to vector<8x128xf32>
    %12 = arith.addf %10, %11 : vector<8x128xf32>
    %c0_9 = arith.constant 0 : index
    %c0_10 = arith.constant 0 : index
    %13 = vector.load %arg1[%c0_9, %c0_10] : memref<8x128xf32, #tpu.memory_space<vmem>>, vector<8x128xf32>
    %c0_11 = arith.constant 0 : index
    %c0_12 = arith.constant 0 : index
    %14 = vector.load %arg6[%c0_11, %c0_12] : memref<128x640xf32, #tpu.memory_space<vmem>>, vector<128x640xf32>
    %cst_13 = arith.constant dense<0.000000e+00> : vector<8x640xf32>
    %15 = tpu.matmul %13, %14, %cst_13 {dimension_numbers = #tpu.dot_dimension_numbers<[1], [0], [0], [1], [0, 0, 1, 1], [], []>} : vector<8x128xf32>, vector<128x640xf32>, vector<8x640xf32> -> vector<8x640xf32>
    %c0_14 = arith.constant 0 : index
    %c0_15 = arith.constant 0 : index
    %16 = vector.load %arg7[%c0_14, %c0_15] : memref<128x640xf32, #tpu.memory_space<vmem>>, vector<128x640xf32>
    %cst_16 = arith.constant dense<0.000000e+00> : vector<8x640xf32>
    %17 = tpu.matmul %12, %16, %cst_16 {dimension_numbers = #tpu.dot_dimension_numbers<[1], [0], [0], [1], [0, 0, 1, 1], [], []>} : vector<8x128xf32>, vector<128x640xf32>, vector<8x640xf32> -> vector<8x640xf32>
    %18 = arith.addf %15, %17 : vector<8x640xf32>
    %c0_17 = arith.constant 0 : index
    %c0_18 = arith.constant 0 : index
    %19 = vector.load %arg8[%c0_17, %c0_18] : memref<1x640xf32, #tpu.memory_space<vmem>>, vector<1x640xf32>
    %20 = vector.broadcast %19 : vector<1x640xf32> to vector<8x640xf32>
    %21 = arith.addf %18, %20 : vector<8x640xf32>
    %22 = vector.extract_strided_slice %21 {offsets = [0, 0], sizes = [8, 512], strides = [1, 1]} : vector<8x640xf32> to vector<8x512xf32>
    %cst_19 = arith.constant 0.000000e+00 : f32
    %23 = vector.broadcast %cst_19 : f32 to vector<8x512xf32>
    %24 = arith.maximumf %22, %23 : vector<8x512xf32>
    %c0_20 = arith.constant 0 : index
    %c0_21 = arith.constant 0 : index
    %25 = vector.load %arg9[%c0_20, %c0_21] : memref<512x128xf32, #tpu.memory_space<vmem>>, vector<512x128xf32>
    %cst_22 = arith.constant dense<0.000000e+00> : vector<8x128xf32>
    %26 = tpu.matmul %24, %25, %cst_22 {dimension_numbers = #tpu.dot_dimension_numbers<[1], [0], [0], [1], [0, 0, 1, 1], [], []>} : vector<8x512xf32>, vector<512x128xf32>, vector<8x128xf32> -> vector<8x128xf32>
    %27 = vector.extract_strided_slice %21 {offsets = [0, 512], sizes = [8, 128], strides = [1, 1]} : vector<8x640xf32> to vector<8x128xf32>
    %28 = arith.addf %26, %27 : vector<8x128xf32>
    %c0_23 = arith.constant 0 : index
    %c0_24 = arith.constant 0 : index
    %29 = vector.load %arg10[%c0_23, %c0_24] : memref<8x128xf32, #tpu.memory_space<vmem>>, vector<8x128xf32>
    tpu.vector_store %arg10[%c0_23, %c0_24], %28 {strides = array<i32>} : memref<8x128xf32, #tpu.memory_space<vmem>>, vector<8x128xf32>,
    return
  }
  func.func @transform_0(%arg0: i32) -> (i32, i32) {
    %c0_i32 = arith.constant 0 : i32
    %c0_i32_0 = arith.constant 0 : i32
    return %arg0, %c0_i32 : i32, i32
  }
  func.func @transform_1(%arg0: i32) -> (i32, i32) {
    %c0_i32 = arith.constant 0 : i32
    %c0_i32_0 = arith.constant 0 : i32
    return %arg0, %c0_i32 : i32, i32
  }
  func.func @transform_2(%arg0: i32) -> (i32, i32) {
    %c0_i32 = arith.constant 0 : i32
    %c0_i32_0 = arith.constant 0 : i32
    %c0_i32_1 = arith.constant 0 : i32
    return %c0_i32, %c0_i32_0 : i32, i32
  }
  func.func @transform_3(%arg0: i32) -> (i32, i32) {
    %c0_i32 = arith.constant 0 : i32
    %c0_i32_0 = arith.constant 0 : i32
    %c0_i32_1 = arith.constant 0 : i32
    return %c0_i32, %c0_i32_0 : i32, i32
  }
  func.func @transform_4(%arg0: i32) -> (i32, i32) {
    %c0_i32 = arith.constant 0 : i32
    %c0_i32_0 = arith.constant 0 : i32
    %c0_i32_1 = arith.constant 0 : i32
    return %c0_i32, %c0_i32_0 : i32, i32
  }
  func.func @transform_5(%arg0: i32) -> (i32, i32) {
    %c0_i32 = arith.constant 0 : i32
    %c0_i32_0 = arith.constant 0 : i32
    %c0_i32_1 = arith.constant 0 : i32
    return %c0_i32, %c0_i32_0 : i32, i32
  }
  func.func @transform_6(%arg0: i32) -> (i32, i32) {
    %c0_i32 = arith.constant 0 : i32
    %c0_i32_0 = arith.constant 0 : i32
    %c0_i32_1 = arith.constant 0 : i32
    return %c0_i32, %c0_i32_0 : i32, i32
  }
  func.func @transform_7(%arg0: i32) -> (i32, i32) {
    %c0_i32 = arith.constant 0 : i32
    %c0_i32_0 = arith.constant 0 : i32
    %c0_i32_1 = arith.constant 0 : i32
    return %c0_i32, %c0_i32_0 : i32, i32
  }
  func.func @transform_8(%arg0: i32) -> (i32, i32) {
    %c0_i32 = arith.constant 0 : i32
    %c0_i32_0 = arith.constant 0 : i32
    %c0_i32_1 = arith.constant 0 : i32
    return %c0_i32, %c0_i32_0 : i32, i32
  }
  func.func @transform_9(%arg0: i32) -> (i32, i32) {
    %c0_i32 = arith.constant 0 : i32
    %c0_i32_0 = arith.constant 0 : i32
    return %arg0, %c0_i32 : i32, i32
  }
}

</mosaic_0001>

<llo_original>
// kernel: tpu_custom_call.1
$region0: #{tpu_custom_call.1}
  #allocation0 [shape = 'u32[]', space=smem, size = 0x4, offset = 0x4, fixed_abs, tag = 'smem constant byte address 0x4 - core index']
  #allocation1 [shape = 'u32[144,128]{1,0:T(1,128)}', space=vmem, size = 0x12000, scoped, tag = 'internal scratch']
  %s0 = inlined_call_operand.hbm [shape: f32[11,128], index: 0, kind: input, shape index: {}]
  %s1 = inlined_call_operand.hbm [shape: f32[11,64], index: 1, kind: input, shape index: {}]
  %s2 = inlined_call_operand.hbm [shape: f32[64,640], index: 2, kind: input, shape index: {}]
  %s3 = inlined_call_operand.vmem [shape: f32[1,640], index: 3, kind: input, shape index: {}]
  %s4 = inlined_call_operand.hbm [shape: f32[512,128], index: 4, kind: input, shape index: {}]
  %s5 = inlined_call_operand.hbm [shape: f32[128,640], index: 5, kind: input, shape index: {}]
  %s6 = inlined_call_operand.hbm [shape: f32[128,640], index: 6, kind: input, shape index: {}]
  %s7 = inlined_call_operand.vmem [shape: f32[1,640], index: 7, kind: input, shape index: {}]
  %s8 = inlined_call_operand.hbm [shape: f32[512,128], index: 8, kind: input, shape index: {}]
  %s9 = inlined_call_operand.hbm [shape: f32[11,128], index: 9, kind: output, shape index: {}]
  %s10 = sld [smem:[#allocation0]]
  $region97: #{tpu_custom_call.1} parent=0
    _
  %s12 = ssub.s32 1, %s10
  %s13 = scalar_select 0, %s12, %s10
  $region1: #{tpu_custom_call.1} parent=0
    #allocation2 [shape = 'u8[8192]{0}', space=vmem, size = 0x2000, scoped, tag = 'input window, operand 0']
    #allocation3 [shape = 's32[2]{0}', space=sflag, size = 0x8, scoped, tag = 'scoped memory for tpu_custom_call.1']
    #allocation4 [shape = 's32[2]{0}', space=sflag, size = 0x8, scoped, tag = 'scoped memory for tpu_custom_call.1']
    #allocation5 [shape = 'u8[8192]{0}', space=vmem, size = 0x2000, scoped, tag = 'input window, operand 1']
    #allocation6 [shape = 's32[2]{0}', space=sflag, size = 0x8, scoped, tag = 'scoped memory for tpu_custom_call.1']
    #allocation7 [shape = 'u8[163840]{0}', space=vmem, size = 0x28000, scoped, tag = 'input window, operand 2, single buffered']
    #allocation8 [shape = 'u8[262144]{0}', space=vmem, size = 0x40000, scoped, tag = 'input window, operand 4, single buffered']
    #allocation9 [shape = 's32[1]{0}', space=sflag, size = 0x4, scoped, tag = 'scoped memory for tpu_custom_call.1']
    #allocation10 [shape = 'u8[327680]{0}', space=vmem, size = 0x50000, scoped, tag = 'input window, operand 5, single buffered']
    #allocation11 [shape = 'u8[327680]{0}', space=vmem, size = 0x50000, scoped, tag = 'input window, operand 6, single buffered']
    #allocation12 [shape = 's32[1]{0}', space=sflag, size = 0x4, scoped, tag = 'scoped memory for tpu_custom_call.1']
    #allocation13 [shape = 'u8[262144]{0}', space=vmem, size = 0x40000, scoped, tag = 'input window, operand 8, single buffered']
    #allocation14 [shape = 'u8[8192]{0}', space=vmem, size = 0x2000, scoped, tag = 'output window, operand 0']
    %14 = vsyncpa [#allocation3], 0
    %s15 = scalar_lea.sflag [#allocation3], 1
    %16 = vsyncpa %s15, 0
    %17 = vsyncpa [#allocation6], 0
    %s18 = scalar_lea.sflag [#allocation6], 1
    %19 = vsyncpa %s18, 0
    %20 = vsyncpa [#allocation9], 0
    %21 = vsyncpa [#allocation12], 0
    %22 = vsyncpa [#allocation4], 0
    %s23 = scalar_lea.sflag [#allocation4], 1
    %24 = vsyncpa %s23, 0
    loop: start=0, step=1, limit=4
    $region2: #{tpu_custom_call.1} parent=1 // loop_pre_header
      _
    $region3: #{tpu_custom_call.1} parent=1 // loop_header
      %s26 = sphi 0, %s30
      %p27 = scmp.ge.s32.totalorder %s26, 4
      %s36 = sphi 0, %s38
      %s39 = sphi 0, %s36
      %s40 = sphi 0, %s39
      %s56 = sphi 0, %s40
      %s62 = sphi 0, %s64
      %s65 = sphi 0, %s62
      %s66 = sphi 0, %s65
      %s82 = sphi 0, %s66
      %s86 = sphi 0, %s86
      %s88 = sphi 0, %s86
      %s89 = sphi 0, %s88
      %s103 = sphi 0, %s89
      %s107 = sphi 0, %s107
      %s109 = sphi 0, %s107
      %s110 = sphi 0, %s109
      %s124 = sphi 0, %s110
      %s128 = sphi 0, %s128
      %s130 = sphi 0, %s128
      %s131 = sphi 0, %s130
      %s145 = sphi 0, %s131
      %s149 = sphi 0, %s149
      %s151 = sphi 0, %s149
      %s152 = sphi 0, %s151
      %s166 = sphi 0, %s152
      %s170 = sphi 0, %s170
      %s172 = sphi 0, %s170
      %s173 = sphi 0, %s172
      %s187 = sphi 0, %s173
      %s191 = sphi 0, %s191
      %s193 = sphi 0, %s191
      %s194 = sphi 0, %s193
      %s208 = sphi 0, %s194
      %s212 = sphi 0, %s212
      %s214 = sphi 0, %s212
      %s215 = sphi 0, %s214
      %s229 = sphi 0, %s215
      %s235 = sphi 0, %s237
      %s238 = sphi 0, %s235
      %s239 = sphi 0, %s238
      %s255 = sphi 0, %s239
    $region4: #{tpu_custom_call.1} parent=1 // loop_header_branch
      %29 = sbr.rel (%p27) target = $region8
    $region5: #{tpu_custom_call.1} parent=1 // loop_body
      %s31 = ssub.s32 %s26, 1
      %s32 = ssub.s32 %s26, 2
      %s33 = sadd.s32 %s26, 1
      %s34 = ssub.s32 %s26, %s33
      %p35 = scmp.eq.s32.totalorder %s34, 0
      %s37 = sadd.s32 %s36, 1
      %s38 = scalar_select %p35, %s36, %s37
      %p41 = pneg %p35
      %p42 = scmp.eq.s32.totalorder %s26, 1
      %p43 = por %p41, %p42
      %p44 = scmp.ne.s32.totalorder %s36, %s39
      %p45 = scmp.eq.s32.totalorder %s26, 0
      %p46 = por %p44, %p45
      %p47 = scmp.ne.s32.totalorder %s36, %s39
      %p48 = scmp.eq.s32.totalorder %s31, 1
      %p49 = por %p47, %p48
      %p50 = scmp.ne.s32.totalorder %s39, %s40
      %p51 = scmp.eq.s32.totalorder %s31, 0
      %p52 = por %p50, %p51
      %p53 = scmp.ne.s32.totalorder %s39, %s40
      %p54 = scmp.eq.s32.totalorder %s32, 1
      %p55 = por %p53, %p54
      %p57 = scmp.ne.s32.totalorder %s40, %s56
      %p58 = scmp.eq.s32.totalorder %s32, 0
      %p59 = por %p57, %p58
      %s60 = ssub.s32 %s26, %s33
      %p61 = scmp.eq.s32.totalorder %s60, 0
      %s63 = sadd.s32 %s62, 1
      %s64 = scalar_select %p61, %s62, %s63
      %p67 = pneg %p61
      %p68 = scmp.eq.s32.totalorder %s26, 1
      %p69 = por %p67, %p68
      %p70 = scmp.ne.s32.totalorder %s62, %s65
      %p71 = scmp.eq.s32.totalorder %s26, 0
      %p72 = por %p70, %p71
      %p73 = scmp.ne.s32.totalorder %s62, %s65
      %p74 = scmp.eq.s32.totalorder %s31, 1
      %p75 = por %p73, %p74
      %p76 = scmp.ne.s32.totalorder %s65, %s66
      %p77 = scmp.eq.s32.totalorder %s31, 0
      %p78 = por %p76, %p77
      %p79 = scmp.ne.s32.totalorder %s65, %s66
      %p80 = scmp.eq.s32.totalorder %s32, 1
      %p81 = por %p79, %p80
      %p83 = scmp.ne.s32.totalorder %s66, %s82
      %p84 = scmp.eq.s32.totalorder %s32, 0
      %p85 = por %p83, %p84
      %s87 = sadd.s32 %s86, 1
      %p90 = scmp.eq.s32.totalorder %s26, 1
      %p91 = scmp.ne.s32.totalorder %s86, %s88
      %p92 = scmp.eq.s32.totalorder %s26, 0
      %p93 = por %p91, %p92
      %p94 = scmp.ne.s32.totalorder %s86, %s88
      %p95 = scmp.eq.s32.totalorder %s31, 1
      %p96 = por %p94, %p95
      %p97 = scmp.ne.s32.totalorder %s88, %s89
      %p98 = scmp.eq.s32.totalorder %s31, 0
      %p99 = por %p97, %p98
      %p100 = scmp.ne.s32.totalorder %s88, %s89
      %p101 = scmp.eq.s32.totalorder %s32, 1
      %p102 = por %p100, %p101
      %p104 = scmp.ne.s32.totalorder %s89, %s103
      %p105 = scmp.eq.s32.totalorder %s32, 0
      %p106 = por %p104, %p105
      %s108 = sadd.s32 %s107, 1
      %p111 = scmp.eq.s32.totalorder %s26, 1
      %p112 = scmp.ne.s32.totalorder %s107, %s109
      %p113 = scmp.eq.s32.totalorder %s26, 0
      %p114 = por %p112, %p113
      %p115 = scmp.ne.s32.totalorder %s107, %s109
      %p116 = scmp.eq.s32.totalorder %s31, 1
      %p117 = por %p115, %p116
      %p118 = scmp.ne.s32.totalorder %s109, %s110
      %p119 = scmp.eq.s32.totalorder %s31, 0
      %p120 = por %p118, %p119
      %p121 = scmp.ne.s32.totalorder %s109, %s110
      %p122 = scmp.eq.s32.totalorder %s32, 1
      %p123 = por %p121, %p122
      %p125 = scmp.ne.s32.totalorder %s110, %s124
      %p126 = scmp.eq.s32.totalorder %s32, 0
      %p127 = por %p125, %p126
      %s129 = sadd.s32 %s128, 1
      %p132 = scmp.eq.s32.totalorder %s26, 1
      %p133 = scmp.ne.s32.totalorder %s128, %s130
      %p134 = scmp.eq.s32.totalorder %s26, 0
      %p135 = por %p133, %p134
      %p136 = scmp.ne.s32.totalorder %s128, %s130
      %p137 = scmp.eq.s32.totalorder %s31, 1
      %p138 = por %p136, %p137
      %p139 = scmp.ne.s32.totalorder %s130, %s131
      %p140 = scmp.eq.s32.totalorder %s31, 0
      %p141 = por %p139, %p140
      %p142 = scmp.ne.s32.totalorder %s130, %s131
      %p143 = scmp.eq.s32.totalorder %s32, 1
      %p144 = por %p142, %p143
      %p146 = scmp.ne.s32.totalorder %s131, %s145
      %p147 = scmp.eq.s32.totalorder %s32, 0
      %p148 = por %p146, %p147
      %s150 = sadd.s32 %s149, 1
      %p153 = scmp.eq.s32.totalorder %s26, 1
      %p154 = scmp.ne.s32.totalorder %s149, %s151
      %p155 = scmp.eq.s32.totalorder %s26, 0
      %p156 = por %p154, %p155
      %p157 = scmp.ne.s32.totalorder %s149, %s151
      %p158 = scmp.eq.s32.totalorder %s31, 1
      %p159 = por %p157, %p158
      %p160 = scmp.ne.s32.totalorder %s151, %s152
      %p161 = scmp.eq.s32.totalorder %s31, 0
      %p162 = por %p160, %p161
      %p163 = scmp.ne.s32.totalorder %s151, %s152
      %p164 = scmp.eq.s32.totalorder %s32, 1
      %p165 = por %p163, %p164
      %p167 = scmp.ne.s32.totalorder %s152, %s166
      %p168 = scmp.eq.s32.totalorder %s32, 0
      %p169 = por %p167, %p168
      %s171 = sadd.s32 %s170, 1
      %p174 = scmp.eq.s32.totalorder %s26, 1
      %p175 = scmp.ne.s32.totalorder %s170, %s172
      %p176 = scmp.eq.s32.totalorder %s26, 0
      %p177 = por %p175, %p176
      %p178 = scmp.ne.s32.totalorder %s170, %s172
      %p179 = scmp.eq.s32.totalorder %s31, 1
      %p180 = por %p178, %p179
      %p181 = scmp.ne.s32.totalorder %s172, %s173
      %p182 = scmp.eq.s32.totalorder %s31, 0
      %p183 = por %p181, %p182
      %p184 = scmp.ne.s32.totalorder %s172, %s173
      %p185 = scmp.eq.s32.totalorder %s32, 1
      %p186 = por %p184, %p185
      %p188 = scmp.ne.s32.totalorder %s173, %s187
      %p189 = scmp.eq.s32.totalorder %s32, 0
      %p190 = por %p188, %p189
      %s192 = sadd.s32 %s191, 1
      %p195 = scmp.eq.s32.totalorder %s26, 1
      %p196 = scmp.ne.s32.totalorder %s191, %s193
      %p197 = scmp.eq.s32.totalorder %s26, 0
      %p198 = por %p196, %p197
      %p199 = scmp.ne.s32.totalorder %s191, %s193
      %p200 = scmp.eq.s32.totalorder %s31, 1
      %p201 = por %p199, %p200
      %p202 = scmp.ne.s32.totalorder %s193, %s194
      %p203 = scmp.eq.s32.totalorder %s31, 0
      %p204 = por %p202, %p203
      %p205 = scmp.ne.s32.totalorder %s193, %s194
      %p206 = scmp.eq.s32.totalorder %s32, 1
      %p207 = por %p205, %p206
      %p209 = scmp.ne.s32.totalorder %s194, %s208
      %p210 = scmp.eq.s32.totalorder %s32, 0
      %p211 = por %p209, %p210
      %s213 = sadd.s32 %s212, 1
      %p216 = scmp.eq.s32.totalorder %s26, 1
      %p217 = scmp.ne.s32.totalorder %s212, %s214
      %p218 = scmp.eq.s32.totalorder %s26, 0
      %p219 = por %p217, %p218
      %p220 = scmp.ne.s32.totalorder %s212, %s214
      %p221 = scmp.eq.s32.totalorder %s31, 1
      %p222 = por %p220, %p221
      %p223 = scmp.ne.s32.totalorder %s214, %s215
      %p224 = scmp.eq.s32.totalorder %s31, 0
      %p225 = por %p223, %p224
      %p226 = scmp.ne.s32.totalorder %s214, %s215
      %p227 = scmp.eq.s32.totalorder %s32, 1
      %p228 = por %p226, %p227
      %p230 = scmp.ne.s32.totalorder %s215, %s229
      %p231 = scmp.eq.s32.totalorder %s32, 0
      %p232 = por %p230, %p231
      %s233 = ssub.s32 %s26, %s33
      %p234 = scmp.eq.s32.totalorder %s233, 0
      %s236 = sadd.s32 %s235, 1
      %s237 = scalar_select %p234, %s235, %s236
      %p240 = pneg %p234
      %p241 = scmp.eq.s32.totalorder %s26, 1
      %p242 = por %p240, %p241
      %p243 = scmp.ne.s32.totalorder %s235, %s238
      %p244 = scmp.eq.s32.totalorder %s26, 0
      %p245 = por %p243, %p244
      %p246 = scmp.ne.s32.totalorder %s235, %s238
      %p247 = scmp.eq.s32.totalorder %s31, 1
      %p248 = por %p246, %p247
      %p249 = scmp.ne.s32.totalorder %s238, %s239
      %p250 = scmp.eq.s32.totalorder %s31, 0
      %p251 = por %p249, %p250
      %p252 = scmp.ne.s32.totalorder %s238, %s239
      %p253 = scmp.eq.s32.totalorder %s32, 1
      %p254 = por %p252, %p253
      %p256 = scmp.ne.s32.totalorder %s239, %s255
      %p257 = scmp.eq.s32.totalorder %s32, 0
      %p258 = por %p256, %p257
      %p259 = scmp.le.s32.totalorder 1, %s26
      %p260 = scmp.lt.s32.totalorder %s26, 3
      %p261 = pnand %p259, %p260
      %p262 = pneg %p261
      // Predicated region
      $region9: #{tpu_custom_call.1} parent=5 // pred_check
        _
      $region10: #{tpu_custom_call.1} parent=5 // pred_check_branch
        %264 = sbr.rel (%p261) target = $region12
      $region11: #{tpu_custom_call.1} parent=5 // pred_region
        %s265 = ssub.s32 %s26, 1
        // Predicated region
        $region13: #{tpu_custom_call.1} parent=11 // pred_check
          %p266 = pneg %p99
        $region14: #{tpu_custom_call.1} parent=11 // pred_check_branch
          %268 = sbr.rel (%p266) target = $region16
        $region15: #{tpu_custom_call.1} parent=11 // pred_region
          %s270 = ssub.s32 5120, 5120
          %271 = vsyncadd [#allocation6], %s270
          %s272 = sshll.u32 [#allocation7], 4
          %s273 = int_to_ptr.vmem [resolvable:$true] %s272
          %278 = dma.hbm_to_vmem [thread:$0]  %s2, 5120, %s273, [#allocation6], 640, 640, 40
        $region16: #{tpu_custom_call.1} parent=11 // pred_fallthru
          _
        // Predicated region
        $region17: #{tpu_custom_call.1} parent=11 // pred_check
          %p279 = pneg %p120
        $region18: #{tpu_custom_call.1} parent=11 // pred_check_branch
          %281 = sbr.rel (%p279) target = $region20
        $region19: #{tpu_custom_call.1} parent=11 // pred_region
          _
        $region20: #{tpu_custom_call.1} parent=11 // pred_fallthru
          _
        // Predicated region
        $region21: #{tpu_custom_call.1} parent=11 // pred_check
          %p282 = pneg %p141
        $region22: #{tpu_custom_call.1} parent=11 // pred_check_branch
          %284 = sbr.rel (%p282) target = $region24
        $region23: #{tpu_custom_call.1} parent=11 // pred_region
          %s286 = ssub.s32 8192, 8192
          %287 = vsyncadd [#allocation9], %s286
          %s288 = sshll.u32 [#allocation8], 4
          %s289 = int_to_ptr.vmem [resolvable:$true] %s288
          %294 = dma.hbm_to_vmem [thread:$0]  %s4, 8192, %s289, [#allocation9], 128, 128, 8
        $region24: #{tpu_custom_call.1} parent=11 // pred_fallthru
          _
        // Predicated region
        $region25: #{tpu_custom_call.1} parent=11 // pred_check
          %p295 = pneg %p162
        $region26: #{tpu_custom_call.1} parent=11 // pred_check_branch
          %297 = sbr.rel (%p295) target = $region28
        $region27: #{tpu_custom_call.1} parent=11 // pred_region
          %s299 = ssub.s32 10240, 10240
          %300 = vsyncadd [#allocation9], %s299
          %s301 = sshll.u32 [#allocation10], 4
          %s302 = int_to_ptr.vmem [resolvable:$true] %s301
          %307 = dma.hbm_to_vmem [thread:$0]  %s5, 10240, %s302, [#allocation9], 640, 640, 40
        $region28: #{tpu_custom_call.1} parent=11 // pred_fallthru
          _
        // Predicated region
        $region29: #{tpu_custom_call.1} parent=11 // pred_check
          %p308 = pneg %p183
        $region30: #{tpu_custom_call.1} parent=11 // pred_check_branch
          %310 = sbr.rel (%p308) target = $region32
        $region31: #{tpu_custom_call.1} parent=11 // pred_region
          %s312 = ssub.s32 10240, 10240
          %313 = vsyncadd [#allocation12], %s312
          %s314 = sshll.u32 [#allocation11], 4
          %s315 = int_to_ptr.vmem [resolvable:$true] %s314
          %320 = dma.hbm_to_vmem [thread:$0]  %s6, 10240, %s315, [#allocation12], 640, 640, 40
        $region32: #{tpu_custom_call.1} parent=11 // pred_fallthru
          _
        // Predicated region
        $region33: #{tpu_custom_call.1} parent=11 // pred_check
          %p321 = pneg %p204
        $region34: #{tpu_custom_call.1} parent=11 // pred_check_branch
          %323 = sbr.rel (%p321) target = $region36
        $region35: #{tpu_custom_call.1} parent=11 // pred_region
          _
        $region36: #{tpu_custom_call.1} parent=11 // pred_fallthru
          _
        // Predicated region
        $region37: #{tpu_custom_call.1} parent=11 // pred_check
          %p324 = pneg %p225
        $region38: #{tpu_custom_call.1} parent=11 // pred_check_branch
          %326 = sbr.rel (%p324) target = $region40
        $region39: #{tpu_custom_call.1} parent=11 // pred_region
          %s328 = ssub.s32 8192, 8192
          %329 = vsyncadd [#allocation12], %s328
          %s330 = sshll.u32 [#allocation13], 4
          %s331 = int_to_ptr.vmem [resolvable:$true] %s330
          %336 = dma.hbm_to_vmem [thread:$0]  %s8, 8192, %s331, [#allocation12], 128, 128, 8
        $region40: #{tpu_custom_call.1} parent=11 // pred_fallthru
          _
      $region12: #{tpu_custom_call.1} parent=5 // pred_fallthru
        _
      %p337 = scmp.lt.s32.totalorder %s26, 2
      // Predicated region
      $region41: #{tpu_custom_call.1} parent=5 // pred_check
        %p338 = pneg %p337
      $region42: #{tpu_custom_call.1} parent=5 // pred_check_branch
        %340 = sbr.rel (%p338) target = $region44
      $region43: #{tpu_custom_call.1} parent=5 // pred_region
        // Predicated region
        $region45: #{tpu_custom_call.1} parent=43 // pred_check
          %p341 = pneg %p46
        $region46: #{tpu_custom_call.1} parent=43 // pred_check_branch
          %343 = sbr.rel (%p341) target = $region48
        $region47: #{tpu_custom_call.1} parent=43 // pred_region
          %s344 = sand.u32 %s36, 1
          %s345 = scalar_lea.sflag [#allocation3], %s344
          %s346 = sand.u32 %s36, 1
          %s347 = smul.addr %s346, 8
          %s348 = scalar_lea.vmem [#allocation2], %s347
          %s350 = ssub.s32 128, 128
          %351 = vsyncadd %s345, %s350
          %s352 = smul.addr %s26, 128
          %s353 = scalar_lea.hbm %s0, %s352
          %s355 = sshll.u32 %s348, 4
          %s356 = int_to_ptr.vmem [resolvable:$true] %s355
          %358 = dma.hbm_to_vmem [thread:$0]  %s353, 128, %s356, %s345
        $region48: #{tpu_custom_call.1} parent=43 // pred_fallthru
          _
        // Predicated region
        $region49: #{tpu_custom_call.1} parent=43 // pred_check
          %p359 = pneg %p72
        $region50: #{tpu_custom_call.1} parent=43 // pred_check_branch
          %361 = sbr.rel (%p359) target = $region52
        $region51: #{tpu_custom_call.1} parent=43 // pred_region
          %s362 = sand.u32 %s26, 1
          %s363 = scalar_lea.sflag [#allocation6], %s362
          %s364 = sand.u32 %s62, 1
          %s365 = smul.addr %s364, 8
          %s366 = scalar_lea.vmem [#allocation5], %s365
          %s368 = ssub.s32 128, 128
          %369 = vsyncadd %s363, %s368
          %s370 = smul.addr %s26, 128
          %s371 = scalar_lea.hbm %s1, %s370
          %s373 = sshll.u32 %s366, 4
          %s374 = int_to_ptr.vmem [resolvable:$true] %s373
          %376 = dma.hbm_to_vmem [thread:$0]  %s371, 128, %s374, %s363
        $region52: #{tpu_custom_call.1} parent=43 // pred_fallthru
          _
      $region44: #{tpu_custom_call.1} parent=5 // pred_fallthru
        _
      %p377 = scmp.le.s32.totalorder 1, %s26
      %p378 = scmp.lt.s32.totalorder %s26, 3
      %p379 = pnand %p377, %p378
      %p380 = pneg %p379
      // Predicated region
      $region53: #{tpu_custom_call.1} parent=5 // pred_check
        _
      $region54: #{tpu_custom_call.1} parent=5 // pred_check_branch
        %382 = sbr.rel (%p379) target = $region56
      $region55: #{tpu_custom_call.1} parent=5 // pred_region
        %s383 = ssub.s32 %s26, 1
        %s384 = sand.u32 %s39, 1
        %s385 = scalar_lea.sflag [#allocation3], %s384
        %s386 = sand.u32 %s39, 1
        %s387 = smul.addr %s386, 8
        %s388 = scalar_lea.vmem [#allocation2], %s387
        // Predicated region
        $region57: #{tpu_custom_call.1} parent=55 // pred_check
          %p389 = pneg %p52
        $region58: #{tpu_custom_call.1} parent=55 // pred_check_branch
          %391 = sbr.rel (%p389) target = $region60
        $region59: #{tpu_custom_call.1} parent=55 // pred_region
          %392 = dma.done %s385, 128
        $region60: #{tpu_custom_call.1} parent=55 // pred_fallthru
          _
        %s393 = sand.u32 %s31, 1
        %s394 = scalar_lea.sflag [#allocation6], %s393
        %s395 = sand.u32 %s65, 1
        %s396 = smul.addr %s395, 8
        %s397 = scalar_lea.vmem [#allocation5], %s396
        // Predicated region
        $region61: #{tpu_custom_call.1} parent=55 // pred_check
          %p398 = pneg %p78
        $region62: #{tpu_custom_call.1} parent=55 // pred_check_branch
          %400 = sbr.rel (%p398) target = $region64
        $region63: #{tpu_custom_call.1} parent=55 // pred_region
          %401 = dma.done %s394, 128
        $region64: #{tpu_custom_call.1} parent=55 // pred_fallthru
          _
        // Predicated region
        $region65: #{tpu_custom_call.1} parent=55 // pred_check
          %p402 = pneg %p99
        $region66: #{tpu_custom_call.1} parent=55 // pred_check_branch
          %404 = sbr.rel (%p402) target = $region68
        $region67: #{tpu_custom_call.1} parent=55 // pred_region
          %405 = dma.done [#allocation6], 5120
        $region68: #{tpu_custom_call.1} parent=55 // pred_fallthru
          _
        // Predicated region
        $region69: #{tpu_custom_call.1} parent=55 // pred_check
          %p406 = pneg %p141
        $region70: #{tpu_custom_call.1} parent=55 // pred_check_branch
          %408 = sbr.rel (%p406) target = $region72
        $region71: #{tpu_custom_call.1} parent=55 // pred_region
          %409 = dma.done [#allocation9], 8192
        $region72: #{tpu_custom_call.1} parent=55 // pred_fallthru
          _
        // Predicated region
        $region73: #{tpu_custom_call.1} parent=55 // pred_check
          %p410 = pneg %p162
        $region74: #{tpu_custom_call.1} parent=55 // pred_check_branch
          %412 = sbr.rel (%p410) target = $region76
        $region75: #{tpu_custom_call.1} parent=55 // pred_region
          %413 = dma.done [#allocation9], 10240
        $region76: #{tpu_custom_call.1} parent=55 // pred_fallthru
          _
        // Predicated region
        $region77: #{tpu_custom_call.1} parent=55 // pred_check
          %p414 = pneg %p183
        $region78: #{tpu_custom_call.1} parent=55 // pred_check_branch
          %416 = sbr.rel (%p414) target = $region80
        $region79: #{tpu_custom_call.1} parent=55 // pred_region
          %417 = dma.done [#allocation12], 10240
        $region80: #{tpu_custom_call.1} parent=55 // pred_fallthru
          _
        // Predicated region
        $region81: #{tpu_custom_call.1} parent=55 // pred_check
          %p418 = pneg %p225
        $region82: #{tpu_custom_call.1} parent=55 // pred_check_branch
          %420 = sbr.rel (%p418) target = $region84
        $region83: #{tpu_custom_call.1} parent=55 // pred_region
          %421 = dma.done [#allocation12], 8192
        $region84: #{tpu_custom_call.1} parent=55 // pred_fallthru
          _
        %s422 = sand.u32 %s39, 1
        %s423 = scalar_lea.sflag [#allocation3], %s422
        %s424 = sand.u32 %s39, 1
        %s425 = smul.addr %s424, 8
        %s426 = scalar_lea.vmem [#allocation2], %s425
        %p427 = pneg %p52
        %p428 = pneg %p49
        %s429 = sand.u32 %s31, 1
        %s430 = scalar_lea.sflag [#allocation6], %s429
        %s431 = sand.u32 %s65, 1
        %s432 = smul.addr %s431, 8
        %s433 = scalar_lea.vmem [#allocation5], %s432
        %p434 = pneg %p78
        %p435 = pneg %p75
        %p436 = pneg %p99
        %p437 = pneg %p96
        %p438 = pneg %p120
        %p439 = pneg %p117
        %p440 = pneg %p141
        %p441 = pneg %p138
        %p442 = pneg %p162
        %p443 = pneg %p159
        %p444 = pneg %p183
        %p445 = pneg %p180
        %p446 = pneg %p204
        %p447 = pneg %p201
        %p448 = pneg %p225
        %p449 = pneg %p222
        %p450 = pneg %p251
        %p451 = pneg %p248
        %s452 = sand.u32 %s238, 1
        %s453 = scalar_lea.sflag [#allocation4], %s452
        %s454 = sand.u32 %s238, 1
        %s455 = smul.addr %s454, 8
        %s456 = scalar_lea.vmem [#allocation14], %s455
        %v457 = vld [vmem:[%s397] sm:$0xff]
        %v458 = vld [vmem:[#allocation7] sm:$0xff]
        %v459 = vld [vmem:[#allocation7 + $0x8] sm:$0xff]
        %v460 = vld [vmem:[#allocation7 + $0x10] sm:$0xff]
        %v461 = vld [vmem:[#allocation7 + $0x18] sm:$0xff]
        %v462 = vld [vmem:[#allocation7 + $0x20] sm:$0xff]
        %v463 = vld [vmem:[#allocation7 + $0x28] sm:$0xff]
        %v464 = vld [vmem:[#allocation7 + $0x30] sm:$0xff]
        %v465 = vld [vmem:[#allocation7 + $0x38] sm:$0xff]
        %v466 = vld [vmem:[#allocation7 + $0x40] sm:$0xff]
        %v467 = vld [vmem:[#allocation7 + $0x48] sm:$0xff]
        %v468 = vld [vmem:[#allocation7 + $0x50] sm:$0xff]
        %v469 = vld [vmem:[#allocation7 + $0x58] sm:$0xff]
        %v470 = vld [vmem:[#allocation7 + $0x60] sm:$0xff]
        %v471 = vld [vmem:[#allocation7 + $0x68] sm:$0xff]
        %v472 = vld [vmem:[#allocation7 + $0x70] sm:$0xff]
        %v473 = vld [vmem:[#allocation7 + $0x78] sm:$0xff]
        %v474 = vld [vmem:[#allocation7 + $0x80] sm:$0xff]
        %v475 = vld [vmem:[#allocation7 + $0x88] sm:$0xff]
        %v476 = vld [vmem:[#allocation7 + $0x90] sm:$0xff]
        %v477 = vld [vmem:[#allocation7 + $0x98] sm:$0xff]
        %v478 = vld [vmem:[#allocation7 + $0xa0] sm:$0xff]
        %v479 = vld [vmem:[#allocation7 + $0xa8] sm:$0xff]
        %v480 = vld [vmem:[#allocation7 + $0xb0] sm:$0xff]
        %v481 = vld [vmem:[#allocation7 + $0xb8] sm:$0xff]
        %v482 = vld [vmem:[#allocation7 + $0xc0] sm:$0xff]
        %v483 = vld [vmem:[#allocation7 + $0xc8] sm:$0xff]
        %v484 = vld [vmem:[#allocation7 + $0xd0] sm:$0xff]
        %v485 = vld [vmem:[#allocation7 + $0xd8] sm:$0xff]
        %v486 = vld [vmem:[#allocation7 + $0xe0] sm:$0xff]
        %v487 = vld [vmem:[#allocation7 + $0xe8] sm:$0xff]
        %v488 = vld [vmem:[#allocation7 + $0xf0] sm:$0xff]
        %v489 = vld [vmem:[#allocation7 + $0xf8] sm:$0xff]
        %v490 = vld [vmem:[#allocation7 + $0x100] sm:$0xff]
        %v491 = vld [vmem:[#allocation7 + $0x108] sm:$0xff]
        %v492 = vld [vmem:[#allocation7 + $0x110] sm:$0xff]
        %v493 = vld [vmem:[#allocation7 + $0x118] sm:$0xff]
        %v494 = vld [vmem:[#allocation7 + $0x120] sm:$0xff]
        %v495 = vld [vmem:[#allocation7 + $0x128] sm:$0xff]
        %v496 = vld [vmem:[#allocation7 + $0x130] sm:$0xff]
        %v497 = vld [vmem:[#allocation7 + $0x138] sm:$0xff]
        %v498 = vld [vmem:[%s3] sm:$0x1f]
        %v500 = vlaneseq
        %v501 = vshrl.u32 %v500, 7
        %v502 = vsub.s32 0, %v501
        %v503 = vrot.slane %v498, %v502
        %v504 = vlaneseq
        %v505 = vshrl.u32 %v504, 7
        %v506 = vsub.s32 1, %v505
        %v507 = vrot.slane %v498, %v506
        %v508 = vlaneseq
        %v509 = vshrl.u32 %v508, 7
        %v510 = vsub.s32 2, %v509
        %v511 = vrot.slane %v498, %v510
        %v512 = vlaneseq
        %v513 = vshrl.u32 %v512, 7
        %v514 = vsub.s32 3, %v513
        %v515 = vrot.slane %v498, %v514
        %v516 = vlaneseq
        %v517 = vshrl.u32 %v516, 7
        %v518 = vsub.s32 4, %v517
        %v519 = vrot.slane %v498, %v518
        %vm525 = vcmask 523264
        %v527 = vsel %vm525, %v457, 0
        %529 = vmatprep.subr.mxu0 %v459
        %530 = vmatpush1.msra.mxu0 %v458
        %531 = vmatprep.subr.mxu0 %v464
        %532 = vmatpush1.msra.mxu0 %v463
        %533 = vmatprep.subr.mxu0 %v469
        %534 = vmatpush1.msra.mxu0 %v468
        %535 = vmatprep.subr.mxu0 %v474
        %536 = vmatpush1.msra.mxu0 %v473
        %537 = vmatprep.subr.mxu0 %v479
        %538 = vmatpush1.msra.mxu0 %v478
        %539 = vmatprep.subr.mxu0 %v484
        %540 = vmatpush1.msra.mxu0 %v483
        %541 = vmatprep.subr.mxu0 %v489
        %542 = vmatpush1.msra.mxu0 %v488
        %543 = vmatprep.subr.mxu0 %v494
        %544 = vmatpush1.msra.mxu0 %v493
        %545 = vmatprep.subr.mxu0 0.0
        %546 = vmatpush1.msra.mxu0 0.0
        %547 = vmatprep.subr.mxu0 0.0
        %548 = vmatpush1.msra.mxu0 0.0
        %549 = vmatprep.subr.mxu0 0.0
        %550 = vmatpush1.msra.mxu0 0.0
        %551 = vmatprep.subr.mxu0 0.0
        %552 = vmatpush1.msra.mxu0 0.0
        %553 = vmatprep.subr.mxu0 0.0
        %554 = vmatpush1.msra.mxu0 0.0
        %555 = vmatprep.subr.mxu0 0.0
        %556 = vmatpush1.msra.mxu0 0.0
        %557 = vmatprep.subr.mxu0 0.0
        %558 = vmatpush1.msra.mxu0 0.0
        %559 = vmatprep.subr.mxu0 0.0
        %560 = vmatpush1.msra.mxu0 0.0
        %561 = vmatprep.subr.mxu0 0.0
        %562 = vmatpush1.msra.mxu0 0.0
        %563 = vmatprep.subr.mxu0 0.0
        %564 = vmatpush1.msra.mxu0 0.0
        %565 = vmatprep.subr.mxu0 0.0
        %566 = vmatpush1.msra.mxu0 0.0
        %567 = vmatprep.subr.mxu0 0.0
        %568 = vmatpush1.msra.mxu0 0.0
        %569 = vmatprep.subr.mxu0 0.0
        %570 = vmatpush1.msra.mxu0 0.0
        %571 = vmatprep.subr.mxu0 0.0
        %572 = vmatpush1.msra.mxu0 0.0
        %573 = vmatprep.subr.mxu0 0.0
        %574 = vmatpush1.msra.mxu0 0.0
        %575 = vmatprep.subr.mxu0 0.0
        %576 = vmatpush1.msra.mxu0 0.0
        %577 = vmatprep.subr.mxu0 0.0
        %578 = vmatpush1.msra.mxu0 0.0
        %579 = vmatprep.subr.mxu0 0.0
        %580 = vmatpush1.msra.mxu0 0.0
        %581 = vmatprep.subr.mxu0 0.0
        %582 = vmatpush1.msra.mxu0 0.0
        %583 = vmatprep.subr.mxu0 0.0
        %584 = vmatpush1.msra.mxu0 0.0
        %585 = vmatprep.subr.mxu0 0.0
        %586 = vmatpush1.msra.mxu0 0.0
        %587 = vmatprep.subr.mxu0 0.0
        %588 = vmatpush1.msra.mxu0 0.0
        %589 = vmatprep.subr.mxu0 0.0
        %590 = vmatpush1.msra.mxu0 0.0
        %591 = vmatprep.subr.mxu0 0.0
        %592 = vmatpush1.msra.mxu0 0.0
        %593 = vmatprep.mubr.f32.mxu0 0.0
        %594 = vmatmul.mubr.f32.gmra.mrb[0].mxu0 %v527
        %v595 = vpop.f32.mrb[0].mxu0
        %v596 = vadd.f32 %v503, %v595
        %v597 = vpop.f32.mrb[0].mxu0
        %v598 = vadd.f32 %v507, %v597
        %599 = vdwg.mxu0
        %600 = vmatprep.subr.mxu0 %v461
        %601 = vmatpush1.msra.mxu0 %v460
        %602 = vmatprep.subr.mxu0 %v466
        %603 = vmatpush1.msra.mxu0 %v465
        %604 = vmatprep.subr.mxu0 %v471
        %605 = vmatpush1.msra.mxu0 %v470
        %606 = vmatprep.subr.mxu0 %v476
        %607 = vmatpush1.msra.mxu0 %v475
        %608 = vmatprep.subr.mxu0 %v481
        %609 = vmatpush1.msra.mxu0 %v480
        %610 = vmatprep.subr.mxu0 %v486
        %611 = vmatpush1.msra.mxu0 %v485
        %612 = vmatprep.subr.mxu0 %v491
        %613 = vmatpush1.msra.mxu0 %v490
        %614 = vmatprep.subr.mxu0 %v496
        %615 = vmatpush1.msra.mxu0 %v495
        %616 = vmatprep.subr.mxu0 0.0
        %617 = vmatpush1.msra.mxu0 0.0
        %618 = vmatprep.subr.mxu0 0.0
        %619 = vmatpush1.msra.mxu0 0.0
        %620 = vmatprep.subr.mxu0 0.0
        %621 = vmatpush1.msra.mxu0 0.0
        %622 = vmatprep.subr.mxu0 0.0
        %623 = vmatpush1.msra.mxu0 0.0
        %624 = vmatprep.subr.mxu0 0.0
        %625 = vmatpush1.msra.mxu0 0.0
        %626 = vmatprep.subr.mxu0 0.0
        %627 = vmatpush1.msra.mxu0 0.0
        %628 = vmatprep.subr.mxu0 0.0
        %629 = vmatpush1.msra.mxu0 0.0
        %630 = vmatprep.subr.mxu0 0.0
        %631 = vmatpush1.msra.mxu0 0.0
        %632 = vmatprep.subr.mxu0 0.0
        %633 = vmatpush1.msra.mxu0 0.0
        %634 = vmatprep.subr.mxu0 0.0
        %635 = vmatpush1.msra.mxu0 0.0
        %636 = vmatprep.subr.mxu0 0.0
        %637 = vmatpush1.msra.mxu0 0.0
        %638 = vmatprep.subr.mxu0 0.0
        %639 = vmatpush1.msra.mxu0 0.0
        %640 = vmatprep.subr.mxu0 0.0
        %641 = vmatpush1.msra.mxu0 0.0
        %642 = vmatprep.subr.mxu0 0.0
        %643 = vmatpush1.msra.mxu0 0.0
        %644 = vmatprep.subr.mxu0 0.0
        %645 = vmatpush1.msra.mxu0 0.0
        %646 = vmatprep.subr.mxu0 0.0
        %647 = vmatpush1.msra.mxu0 0.0
        %648 = vmatprep.subr.mxu0 0.0
        %649 = vmatpush1.msra.mxu0 0.0
        %650 = vmatprep.subr.mxu0 0.0
        %651 = vmatpush1.msra.mxu0 0.0
        %652 = vmatprep.subr.mxu0 0.0
        %653 = vmatpush1.msra.mxu0 0.0
        %654 = vmatprep.subr.mxu0 0.0
        %655 = vmatpush1.msra.mxu0 0.0
        %656 = vmatprep.subr.mxu0 0.0
        %657 = vmatpush1.msra.mxu0 0.0
        %658 = vmatprep.subr.mxu0 0.0
        %659 = vmatpush1.msra.mxu0 0.0
        %660 = vmatprep.subr.mxu0 0.0
        %661 = vmatpush1.msra.mxu0 0.0
        %662 = vmatprep.subr.mxu0 0.0
        %663 = vmatpush1.msra.mxu0 0.0
        %664 = vmatprep.mubr.f32.mxu0 0.0
        %665 = vmatmul.mubr.f32.gmra.mrb[0].mxu0 %v527
        %v666 = vpop.f32.mrb[0].mxu0
        %v667 = vadd.f32 %v511, %v666
        %v668 = vpop.f32.mrb[0].mxu0
        %v669 = vadd.f32 %v515, %v668
        %670 = vdwg.mxu0
        %671 = vmatprep.subr.mxu0 0.0
        %672 = vmatpush1.msra.mxu0 %v462
        %673 = vmatprep.subr.mxu0 0.0
        %674 = vmatpush1.msra.mxu0 %v467
        %675 = vmatprep.subr.mxu0 0.0
        %676 = vmatpush1.msra.mxu0 %v472
        %677 = vmatprep.subr.mxu0 0.0
        %678 = vmatpush1.msra.mxu0 %v477
        %679 = vmatprep.subr.mxu0 0.0
        %680 = vmatpush1.msra.mxu0 %v482
        %681 = vmatprep.subr.mxu0 0.0
        %682 = vmatpush1.msra.mxu0 %v487
        %683 = vmatprep.subr.mxu0 0.0
        %684 = vmatpush1.msra.mxu0 %v492
        %685 = vmatprep.subr.mxu0 0.0
        %686 = vmatpush1.msra.mxu0 %v497
        %687 = vmatprep.subr.mxu0 0.0
        %688 = vmatpush1.msra.mxu0 0.0
        %689 = vmatprep.subr.mxu0 0.0
        %690 = vmatpush1.msra.mxu0 0.0
        %691 = vmatprep.subr.mxu0 0.0
        %692 = vmatpush1.msra.mxu0 0.0
        %693 = vmatprep.subr.mxu0 0.0
        %694 = vmatpush1.msra.mxu0 0.0
        %695 = vmatprep.subr.mxu0 0.0
        %696 = vmatpush1.msra.mxu0 0.0
        %697 = vmatprep.subr.mxu0 0.0
        %698 = vmatpush1.msra.mxu0 0.0
        %699 = vmatprep.subr.mxu0 0.0
        %700 = vmatpush1.msra.mxu0 0.0
        %701 = vmatprep.subr.mxu0 0.0
        %702 = vmatpush1.msra.mxu0 0.0
        %703 = vmatprep.subr.mxu0 0.0
        %704 = vmatpush1.msra.mxu0 0.0
        %705 = vmatprep.subr.mxu0 0.0
        %706 = vmatpush1.msra.mxu0 0.0
        %707 = vmatprep.subr.mxu0 0.0
        %708 = vmatpush1.msra.mxu0 0.0
        %709 = vmatprep.subr.mxu0 0.0
        %710 = vmatpush1.msra.mxu0 0.0
        %711 = vmatprep.subr.mxu0 0.0
        %712 = vmatpush1.msra.mxu0 0.0
        %713 = vmatprep.subr.mxu0 0.0
        %714 = vmatpush1.msra.mxu0 0.0
        %715 = vmatprep.subr.mxu0 0.0
        %716 = vmatpush1.msra.mxu0 0.0
        %717 = vmatprep.subr.mxu0 0.0
        %718 = vmatpush1.msra.mxu0 0.0
        %719 = vmatprep.subr.mxu0 0.0
        %720 = vmatpush1.msra.mxu0 0.0
        %721 = vmatprep.subr.mxu0 0.0
        %722 = vmatpush1.msra.mxu0 0.0
        %723 = vmatprep.subr.mxu0 0.0
        %724 = vmatpush1.msra.mxu0 0.0
        %725 = vmatprep.subr.mxu0 0.0
        %726 = vmatpush1.msra.mxu0 0.0
        %727 = vmatprep.subr.mxu0 0.0
        %728 = vmatpush1.msra.mxu0 0.0
        %729 = vmatprep.subr.mxu0 0.0
        %730 = vmatpush1.msra.mxu0 0.0
        %731 = vmatprep.subr.mxu0 0.0
        %732 = vmatpush1.msra.mxu0 0.0
        %733 = vmatprep.subr.mxu0 0.0
        %734 = vmatpush1.msra.mxu0 0.0
        %735 = vmatprep.mubr.f32.mxu0 0.0
        %736 = vmatmul.mubr.f32.gmra.mrb[0].mxu0 %v527
        %v737 = vpop.f32.mrb[0].mxu0
        %v738 = vadd.f32 %v519, %v737
        %v739 = vpop.f32.mrb[0].mxu0
        %740 = vdwg.mxu0
        %v741 = vmax.f32 %v596, 0.0
        %v742 = vmax.f32 %v598, 0.0
        %v743 = vmax.f32 %v667, 0.0
        %v744 = vmax.f32 %v669, 0.0
        %v745 = vld [vmem:[#allocation8] sm:$0xff]
        %v746 = vld [vmem:[#allocation8 + $0x8] sm:$0xff]
        %v747 = vld [vmem:[#allocation8 + $0x10] sm:$0xff]
        %v748 = vld [vmem:[#allocation8 + $0x18] sm:$0xff]
        %v749 = vld [vmem:[#allocation8 + $0x20] sm:$0xff]
        %v750 = vld [vmem:[#allocation8 + $0x28] sm:$0xff]
        %v751 = vld [vmem:[#allocation8 + $0x30] sm:$0xff]
        %v752 = vld [vmem:[#allocation8 + $0x38] sm:$0xff]
        %v753 = vld [vmem:[#allocation8 + $0x40] sm:$0xff]
        %v754 = vld [vmem:[#allocation8 + $0x48] sm:$0xff]
        %v755 = vld [vmem:[#allocation8 + $0x50] sm:$0xff]
        %v756 = vld [vmem:[#allocation8 + $0x58] sm:$0xff]
        %v757 = vld [vmem:[#allocation8 + $0x60] sm:$0xff]
        %v758 = vld [vmem:[#allocation8 + $0x68] sm:$0xff]
        %v759 = vld [vmem:[#allocation8 + $0x70] sm:$0xff]
        %v760 = vld [vmem:[#allocation8 + $0x78] sm:$0xff]
        %v761 = vld [vmem:[#allocation8 + $0x80] sm:$0xff]
        %v762 = vld [vmem:[#allocation8 + $0x88] sm:$0xff]
        %v763 = vld [vmem:[#allocation8 + $0x90] sm:$0xff]
        %v764 = vld [vmem:[#allocation8 + $0x98] sm:$0xff]
        %v765 = vld [vmem:[#allocation8 + $0xa0] sm:$0xff]
        %v766 = vld [vmem:[#allocation8 + $0xa8] sm:$0xff]
        %v767 = vld [vmem:[#allocation8 + $0xb0] sm:$0xff]
        %v768 = vld [vmem:[#allocation8 + $0xb8] sm:$0xff]
        %v769 = vld [vmem:[#allocation8 + $0xc0] sm:$0xff]
        %v770 = vld [vmem:[#allocation8 + $0xc8] sm:$0xff]
        %v771 = vld [vmem:[#allocation8 + $0xd0] sm:$0xff]
        %v772 = vld [vmem:[#allocation8 + $0xd8] sm:$0xff]
        %v773 = vld [vmem:[#allocation8 + $0xe0] sm:$0xff]
        %v774 = vld [vmem:[#allocation8 + $0xe8] sm:$0xff]
        %v775 = vld [vmem:[#allocation8 + $0xf0] sm:$0xff]
        %v776 = vld [vmem:[#allocation8 + $0xf8] sm:$0xff]
        %v777 = vld [vmem:[#allocation8 + $0x100] sm:$0xff]
        %v778 = vld [vmem:[#allocation8 + $0x108] sm:$0xff]
        %v779 = vld [vmem:[#allocation8 + $0x110] sm:$0xff]
        %v780 = vld [vmem:[#allocation8 + $0x118] sm:$0xff]
        %v781 = vld [vmem:[#allocation8 + $0x120] sm:$0xff]
        %v782 = vld [vmem:[#allocation8 + $0x128] sm:$0xff]
        %v783 = vld [vmem:[#allocation8 + $0x130] sm:$0xff]
        %v784 = vld [vmem:[#allocation8 + $0x138] sm:$0xff]
        %v785 = vld [vmem:[#allocation8 + $0x140] sm:$0xff]
        %v786 = vld [vmem:[#allocation8 + $0x148] sm:$0xff]
        %v787 = vld [vmem:[#allocation8 + $0x150] sm:$0xff]
        %v788 = vld [vmem:[#allocation8 + $0x158] sm:$0xff]
        %v789 = vld [vmem:[#allocation8 + $0x160] sm:$0xff]
        %v790 = vld [vmem:[#allocation8 + $0x168] sm:$0xff]
        %v791 = vld [vmem:[#allocation8 + $0x170] sm:$0xff]
        %v792 = vld [vmem:[#allocation8 + $0x178] sm:$0xff]
        %v793 = vld [vmem:[#allocation8 + $0x180] sm:$0xff]
        %v794 = vld [vmem:[#allocation8 + $0x188] sm:$0xff]
        %v795 = vld [vmem:[#allocation8 + $0x190] sm:$0xff]
        %v796 = vld [vmem:[#allocation8 + $0x198] sm:$0xff]
        %v797 = vld [vmem:[#allocation8 + $0x1a0] sm:$0xff]
        %v798 = vld [vmem:[#allocation8 + $0x1a8] sm:$0xff]
        %v799 = vld [vmem:[#allocation8 + $0x1b0] sm:$0xff]
        %v800 = vld [vmem:[#allocation8 + $0x1b8] sm:$0xff]
        %v801 = vld [vmem:[#allocation8 + $0x1c0] sm:$0xff]
        %v802 = vld [vmem:[#allocation8 + $0x1c8] sm:$0xff]
        %v803 = vld [vmem:[#allocation8 + $0x1d0] sm:$0xff]
        %v804 = vld [vmem:[#allocation8 + $0x1d8] sm:$0xff]
        %v805 = vld [vmem:[#allocation8 + $0x1e0] sm:$0xff]
        %v806 = vld [vmem:[#allocation8 + $0x1e8] sm:$0xff]
        %v807 = vld [vmem:[#allocation8 + $0x1f0] sm:$0xff]
        %v808 = vld [vmem:[#allocation8 + $0x1f8] sm:$0xff]
        %809 = vmatprep.subr.mxu0 0.0
        %810 = vmatpush1.msra.mxu0 %v745
        %811 = vmatprep.subr.mxu0 0.0
        %812 = vmatpush1.msra.mxu0 %v746
        %813 = vmatprep.subr.mxu0 0.0
        %814 = vmatpush1.msra.mxu0 %v747
        %815 = vmatprep.subr.mxu0 0.0
        %816 = vmatpush1.msra.mxu0 %v748
        %817 = vmatprep.subr.mxu0 0.0
        %818 = vmatpush1.msra.mxu0 %v749
        %819 = vmatprep.subr.mxu0 0.0
        %820 = vmatpush1.msra.mxu0 %v750
        %821 = vmatprep.subr.mxu0 0.0
        %822 = vmatpush1.msra.mxu0 %v751
        %823 = vmatprep.subr.mxu0 0.0
        %824 = vmatpush1.msra.mxu0 %v752
        %825 = vmatprep.subr.mxu0 0.0
        %826 = vmatpush1.msra.mxu0 %v753
        %827 = vmatprep.subr.mxu0 0.0
        %828 = vmatpush1.msra.mxu0 %v754
        %829 = vmatprep.subr.mxu0 0.0
        %830 = vmatpush1.msra.mxu0 %v755
        %831 = vmatprep.subr.mxu0 0.0
        %832 = vmatpush1.msra.mxu0 %v756
        %833 = vmatprep.subr.mxu0 0.0
        %834 = vmatpush1.msra.mxu0 %v757
        %835 = vmatprep.subr.mxu0 0.0
        %836 = vmatpush1.msra.mxu0 %v758
        %837 = vmatprep.subr.mxu0 0.0
        %838 = vmatpush1.msra.mxu0 %v759
        %839 = vmatprep.subr.mxu0 0.0
        %840 = vmatpush1.msra.mxu0 %v760
        %841 = vmatprep.subr.mxu0 0.0
        %842 = vmatpush1.msra.mxu0 %v761
        %843 = vmatprep.subr.mxu0 0.0
        %844 = vmatpush1.msra.mxu0 %v762
        %845 = vmatprep.subr.mxu0 0.0
        %846 = vmatpush1.msra.mxu0 %v763
        %847 = vmatprep.subr.mxu0 0.0
        %848 = vmatpush1.msra.mxu0 %v764
        %849 = vmatprep.subr.mxu0 0.0
        %850 = vmatpush1.msra.mxu0 %v765
        %851 = vmatprep.subr.mxu0 0.0
        %852 = vmatpush1.msra.mxu0 %v766
        %853 = vmatprep.subr.mxu0 0.0
        %854 = vmatpush1.msra.mxu0 %v767
        %855 = vmatprep.subr.mxu0 0.0
        %856 = vmatpush1.msra.mxu0 %v768
        %857 = vmatprep.subr.mxu0 0.0
        %858 = vmatpush1.msra.mxu0 %v769
        %859 = vmatprep.subr.mxu0 0.0
        %860 = vmatpush1.msra.mxu0 %v770
        %861 = vmatprep.subr.mxu0 0.0
        %862 = vmatpush1.msra.mxu0 %v771
        %863 = vmatprep.subr.mxu0 0.0
        %864 = vmatpush1.msra.mxu0 %v772
        %865 = vmatprep.subr.mxu0 0.0
        %866 = vmatpush1.msra.mxu0 %v773
        %867 = vmatprep.subr.mxu0 0.0
        %868 = vmatpush1.msra.mxu0 %v774
        %869 = vmatprep.subr.mxu0 0.0
        %870 = vmatpush1.msra.mxu0 %v775
        %871 = vmatprep.subr.mxu0 0.0
        %872 = vmatpush1.msra.mxu0 %v776
        %873 = vmatprep.mubr.f32.mxu0 %v742
        %874 = vmatmul.mubr.f32.gmra.mrb[0].mxu0 %v741
        %v875 = vpop.f32.mrb[0].mxu0
        %v876 = vadd.f32 %v738, %v875
        %v877 = vpop.f32.mrb[0].mxu0
        %878 = vdwg.mxu0
        %879 = vmatprep.subr.mxu0 0.0
        %880 = vmatpush1.msra.mxu0 %v777
        %881 = vmatprep.subr.mxu0 0.0
        %882 = vmatpush1.msra.mxu0 %v778
        %883 = vmatprep.subr.mxu0 0.0
        %884 = vmatpush1.msra.mxu0 %v779
        %885 = vmatprep.subr.mxu0 0.0
        %886 = vmatpush1.msra.mxu0 %v780
        %887 = vmatprep.subr.mxu0 0.0
        %888 = vmatpush1.msra.mxu0 %v781
        %889 = vmatprep.subr.mxu0 0.0
        %890 = vmatpush1.msra.mxu0 %v782
        %891 = vmatprep.subr.mxu0 0.0
        %892 = vmatpush1.msra.mxu0 %v783
        %893 = vmatprep.subr.mxu0 0.0
        %894 = vmatpush1.msra.mxu0 %v784
        %895 = vmatprep.subr.mxu0 0.0
        %896 = vmatpush1.msra.mxu0 %v785
        %897 = vmatprep.subr.mxu0 0.0
        %898 = vmatpush1.msra.mxu0 %v786
        %899 = vmatprep.subr.mxu0 0.0
        %900 = vmatpush1.msra.mxu0 %v787
        %901 = vmatprep.subr.mxu0 0.0
        %902 = vmatpush1.msra.mxu0 %v788
        %903 = vmatprep.subr.mxu0 0.0
        %904 = vmatpush1.msra.mxu0 %v789
        %905 = vmatprep.subr.mxu0 0.0
        %906 = vmatpush1.msra.mxu0 %v790
        %907 = vmatprep.subr.mxu0 0.0
        %908 = vmatpush1.msra.mxu0 %v791
        %909 = vmatprep.subr.mxu0 0.0
        %910 = vmatpush1.msra.mxu0 %v792
        %911 = vmatprep.subr.mxu0 0.0
        %912 = vmatpush1.msra.mxu0 %v793
        %913 = vmatprep.subr.mxu0 0.0
        %914 = vmatpush1.msra.mxu0 %v794
        %915 = vmatprep.subr.mxu0 0.0
        %916 = vmatpush1.msra.mxu0 %v795
        %917 = vmatprep.subr.mxu0 0.0
        %918 = vmatpush1.msra.mxu0 %v796
        %919 = vmatprep.subr.mxu0 0.0
        %920 = vmatpush1.msra.mxu0 %v797
        %921 = vmatprep.subr.mxu0 0.0
        %922 = vmatpush1.msra.mxu0 %v798
        %923 = vmatprep.subr.mxu0 0.0
        %924 = vmatpush1.msra.mxu0 %v799
        %925 = vmatprep.subr.mxu0 0.0
        %926 = vmatpush1.msra.mxu0 %v800
        %927 = vmatprep.subr.mxu0 0.0
        %928 = vmatpush1.msra.mxu0 %v801
        %929 = vmatprep.subr.mxu0 0.0
        %930 = vmatpush1.msra.mxu0 %v802
        %931 = vmatprep.subr.mxu0 0.0
        %932 = vmatpush1.msra.mxu0 %v803
        %933 = vmatprep.subr.mxu0 0.0
        %934 = vmatpush1.msra.mxu0 %v804
        %935 = vmatprep.subr.mxu0 0.0
        %936 = vmatpush1.msra.mxu0 %v805
        %937 = vmatprep.subr.mxu0 0.0
        %938 = vmatpush1.msra.mxu0 %v806
        %939 = vmatprep.subr.mxu0 0.0
        %940 = vmatpush1.msra.mxu0 %v807
        %941 = vmatprep.subr.mxu0 0.0
        %942 = vmatpush1.msra.mxu0 %v808
        %943 = vmatprep.mubr.f32.mxu0 %v744
        %944 = vmatmul.mubr.f32.gmra.mrb[0].mxu0 %v743
        %v945 = vpop.f32.mrb[0].mxu0
        %v946 = vadd.f32 %v876, %v945
        %v947 = vpop.f32.mrb[0].mxu0
        %948 = vdwg.mxu0
        %v949 = vld [vmem:[%s388] sm:$0xff]
        %v950 = vld [vmem:[#allocation10] sm:$0xff]
        %v951 = vld [vmem:[#allocation10 + $0x8] sm:$0xff]
        %v952 = vld [vmem:[#allocation10 + $0x10] sm:$0xff]
        %v953 = vld [vmem:[#allocation10 + $0x18] sm:$0xff]
        %v954 = vld [vmem:[#allocation10 + $0x20] sm:$0xff]
        %v955 = vld [vmem:[#allocation10 + $0x28] sm:$0xff]
        %v956 = vld [vmem:[#allocation10 + $0x30] sm:$0xff]
        %v957 = vld [vmem:[#allocation10 + $0x38] sm:$0xff]
        %v958 = vld [vmem:[#allocation10 + $0x40] sm:$0xff]
        %v959 = vld [vmem:[#allocation10 + $0x48] sm:$0xff]
        %v960 = vld [vmem:[#allocation10 + $0x50] sm:$0xff]
        %v961 = vld [vmem:[#allocation10 + $0x58] sm:$0xff]
        %v962 = vld [vmem:[#allocation10 + $0x60] sm:$0xff]
        %v963 = vld [vmem:[#allocation10 + $0x68] sm:$0xff]
        %v964 = vld [vmem:[#allocation10 + $0x70] sm:$0xff]
        %v965 = vld [vmem:[#allocation10 + $0x78] sm:$0xff]
        %v966 = vld [vmem:[#allocation10 + $0x80] sm:$0xff]
        %v967 = vld [vmem:[#allocation10 + $0x88] sm:$0xff]
        %v968 = vld [vmem:[#allocation10 + $0x90] sm:$0xff]
        %v969 = vld [vmem:[#allocation10 + $0x98] sm:$0xff]
        %v970 = vld [vmem:[#allocation10 + $0xa0] sm:$0xff]
        %v971 = vld [vmem:[#allocation10 + $0xa8] sm:$0xff]
        %v972 = vld [vmem:[#allocation10 + $0xb0] sm:$0xff]
        %v973 = vld [vmem:[#allocation10 + $0xb8] sm:$0xff]
        %v974 = vld [vmem:[#allocation10 + $0xc0] sm:$0xff]
        %v975 = vld [vmem:[#allocation10 + $0xc8] sm:$0xff]
        %v976 = vld [vmem:[#allocation10 + $0xd0] sm:$0xff]
        %v977 = vld [vmem:[#allocation10 + $0xd8] sm:$0xff]
        %v978 = vld [vmem:[#allocation10 + $0xe0] sm:$0xff]
        %v979 = vld [vmem:[#allocation10 + $0xe8] sm:$0xff]
        %v980 = vld [vmem:[#allocation10 + $0xf0] sm:$0xff]
        %v981 = vld [vmem:[#allocation10 + $0xf8] sm:$0xff]
        %v982 = vld [vmem:[#allocation10 + $0x100] sm:$0xff]
        %v983 = vld [vmem:[#allocation10 + $0x108] sm:$0xff]
        %v984 = vld [vmem:[#allocation10 + $0x110] sm:$0xff]
        %v985 = vld [vmem:[#allocation10 + $0x118] sm:$0xff]
        %v986 = vld [vmem:[#allocation10 + $0x120] sm:$0xff]
        %v987 = vld [vmem:[#allocation10 + $0x128] sm:$0xff]
        %v988 = vld [vmem:[#allocation10 + $0x130] sm:$0xff]
        %v989 = vld [vmem:[#allocation10 + $0x138] sm:$0xff]
        %v990 = vld [vmem:[#allocation10 + $0x140] sm:$0xff]
        %v991 = vld [vmem:[#allocation10 + $0x148] sm:$0xff]
        %v992 = vld [vmem:[#allocation10 + $0x150] sm:$0xff]
        %v993 = vld [vmem:[#allocation10 + $0x158] sm:$0xff]
        %v994 = vld [vmem:[#allocation10 + $0x160] sm:$0xff]
        %v995 = vld [vmem:[#allocation10 + $0x168] sm:$0xff]
        %v996 = vld [vmem:[#allocation10 + $0x170] sm:$0xff]
        %v997 = vld [vmem:[#allocation10 + $0x178] sm:$0xff]
        %v998 = vld [vmem:[#allocation10 + $0x180] sm:$0xff]
        %v999 = vld [vmem:[#allocation10 + $0x188] sm:$0xff]
        %v1000 = vld [vmem:[#allocation10 + $0x190] sm:$0xff]
        %v1001 = vld [vmem:[#allocation10 + $0x198] sm:$0xff]
        %v1002 = vld [vmem:[#allocation10 + $0x1a0] sm:$0xff]
        %v1003 = vld [vmem:[#allocation10 + $0x1a8] sm:$0xff]
        %v1004 = vld [vmem:[#allocation10 + $0x1b0] sm:$0xff]
        %v1005 = vld [vmem:[#allocation10 + $0x1b8] sm:$0xff]
        %v1006 = vld [vmem:[#allocation10 + $0x1c0] sm:$0xff]
        %v1007 = vld [vmem:[#allocation10 + $0x1c8] sm:$0xff]
        %v1008 = vld [vmem:[#allocation10 + $0x1d0] sm:$0xff]
        %v1009 = vld [vmem:[#allocation10 + $0x1d8] sm:$0xff]
        %v1010 = vld [vmem:[#allocation10 + $0x1e0] sm:$0xff]
        %v1011 = vld [vmem:[#allocation10 + $0x1e8] sm:$0xff]
        %v1012 = vld [vmem:[#allocation10 + $0x1f0] sm:$0xff]
        %v1013 = vld [vmem:[#allocation10 + $0x1f8] sm:$0xff]
        %v1014 = vld [vmem:[#allocation10 + $0x200] sm:$0xff]
        %v1015 = vld [vmem:[#allocation10 + $0x208] sm:$0xff]
        %v1016 = vld [vmem:[#allocation10 + $0x210] sm:$0xff]
        %v1017 = vld [vmem:[#allocation10 + $0x218] sm:$0xff]
        %v1018 = vld [vmem:[#allocation10 + $0x220] sm:$0xff]
        %v1019 = vld [vmem:[#allocation10 + $0x228] sm:$0xff]
        %v1020 = vld [vmem:[#allocation10 + $0x230] sm:$0xff]
        %v1021 = vld [vmem:[#allocation10 + $0x238] sm:$0xff]
        %v1022 = vld [vmem:[#allocation10 + $0x240] sm:$0xff]
        %v1023 = vld [vmem:[#allocation10 + $0x248] sm:$0xff]
        %v1024 = vld [vmem:[#allocation10 + $0x250] sm:$0xff]
        %v1025 = vld [vmem:[#allocation10 + $0x258] sm:$0xff]
        %v1026 = vld [vmem:[#allocation10 + $0x260] sm:$0xff]
        %v1027 = vld [vmem:[#allocation10 + $0x268] sm:$0xff]
        %v1028 = vld [vmem:[#allocation10 + $0x270] sm:$0xff]
        %v1029 = vld [vmem:[#allocation10 + $0x278] sm:$0xff]
        %v1030 = vld [vmem:[#allocation11] sm:$0xff]
        %v1031 = vld [vmem:[#allocation11 + $0x8] sm:$0xff]
        %v1032 = vld [vmem:[#allocation11 + $0x10] sm:$0xff]
        %v1033 = vld [vmem:[#allocation11 + $0x18] sm:$0xff]
        %v1034 = vld [vmem:[#allocation11 + $0x20] sm:$0xff]
        %v1035 = vld [vmem:[#allocation11 + $0x28] sm:$0xff]
        %v1036 = vld [vmem:[#allocation11 + $0x30] sm:$0xff]
        %v1037 = vld [vmem:[#allocation11 + $0x38] sm:$0xff]
        %v1038 = vld [vmem:[#allocation11 + $0x40] sm:$0xff]
        %v1039 = vld [vmem:[#allocation11 + $0x48] sm:$0xff]
        %v1040 = vld [vmem:[#allocation11 + $0x50] sm:$0xff]
        %v1041 = vld [vmem:[#allocation11 + $0x58] sm:$0xff]
        %v1042 = vld [vmem:[#allocation11 + $0x60] sm:$0xff]
        %v1043 = vld [vmem:[#allocation11 + $0x68] sm:$0xff]
        %v1044 = vld [vmem:[#allocation11 + $0x70] sm:$0xff]
        %v1045 = vld [vmem:[#allocation11 + $0x78] sm:$0xff]
        %v1046 = vld [vmem:[#allocation11 + $0x80] sm:$0xff]
        %v1047 = vld [vmem:[#allocation11 + $0x88] sm:$0xff]
        %v1048 = vld [vmem:[#allocation11 + $0x90] sm:$0xff]
        %v1049 = vld [vmem:[#allocation11 + $0x98] sm:$0xff]
        %v1050 = vld [vmem:[#allocation11 + $0xa0] sm:$0xff]
        %v1051 = vld [vmem:[#allocation11 + $0xa8] sm:$0xff]
        %v1052 = vld [vmem:[#allocation11 + $0xb0] sm:$0xff]
        %v1053 = vld [vmem:[#allocation11 + $0xb8] sm:$0xff]
        %v1054 = vld [vmem:[#allocation11 + $0xc0] sm:$0xff]
        %v1055 = vld [vmem:[#allocation11 + $0xc8] sm:$0xff]
        %v1056 = vld [vmem:[#allocation11 + $0xd0] sm:$0xff]
        %v1057 = vld [vmem:[#allocation11 + $0xd8] sm:$0xff]
        %v1058 = vld [vmem:[#allocation11 + $0xe0] sm:$0xff]
        %v1059 = vld [vmem:[#allocation11 + $0xe8] sm:$0xff]
        %v1060 = vld [vmem:[#allocation11 + $0xf0] sm:$0xff]
        %v1061 = vld [vmem:[#allocation11 + $0xf8] sm:$0xff]
        %v1062 = vld [vmem:[#allocation11 + $0x100] sm:$0xff]
        %v1063 = vld [vmem:[#allocation11 + $0x108] sm:$0xff]
        %v1064 = vld [vmem:[#allocation11 + $0x110] sm:$0xff]
        %v1065 = vld [vmem:[#allocation11 + $0x118] sm:$0xff]
        %v1066 = vld [vmem:[#allocation11 + $0x120] sm:$0xff]
        %v1067 = vld [vmem:[#allocation11 + $0x128] sm:$0xff]
        %v1068 = vld [vmem:[#allocation11 + $0x130] sm:$0xff]
        %v1069 = vld [vmem:[#allocation11 + $0x138] sm:$0xff]
        %v1070 = vld [vmem:[#allocation11 + $0x140] sm:$0xff]
        %v1071 = vld [vmem:[#allocation11 + $0x148] sm:$0xff]
        %v1072 = vld [vmem:[#allocation11 + $0x150] sm:$0xff]
        %v1073 = vld [vmem:[#allocation11 + $0x158] sm:$0xff]
        %v1074 = vld [vmem:[#allocation11 + $0x160] sm:$0xff]
        %v1075 = vld [vmem:[#allocation11 + $0x168] sm:$0xff]
        %v1076 = vld [vmem:[#allocation11 + $0x170] sm:$0xff]
        %v1077 = vld [vmem:[#allocation11 + $0x178] sm:$0xff]
        %v1078 = vld [vmem:[#allocation11 + $0x180] sm:$0xff]
        %v1079 = vld [vmem:[#allocation11 + $0x188] sm:$0xff]
        %v1080 = vld [vmem:[#allocation11 + $0x190] sm:$0xff]
        %v1081 = vld [vmem:[#allocation11 + $0x198] sm:$0xff]
        %v1082 = vld [vmem:[#allocation11 + $0x1a0] sm:$0xff]
        %v1083 = vld [vmem:[#allocation11 + $0x1a8] sm:$0xff]
        %v1084 = vld [vmem:[#allocation11 + $0x1b0] sm:$0xff]
        %v1085 = vld [vmem:[#allocation11 + $0x1b8] sm:$0xff]
        %v1086 = vld [vmem:[#allocation11 + $0x1c0] sm:$0xff]
        %v1087 = vld [vmem:[#allocation11 + $0x1c8] sm:$0xff]
        %v1088 = vld [vmem:[#allocation11 + $0x1d0] sm:$0xff]
        %v1089 = vld [vmem:[#allocation11 + $0x1d8] sm:$0xff]
        %v1090 = vld [vmem:[#allocation11 + $0x1e0] sm:$0xff]
        %v1091 = vld [vmem:[#allocation11 + $0x1e8] sm:$0xff]
        %v1092 = vld [vmem:[#allocation11 + $0x1f0] sm:$0xff]
        %v1093 = vld [vmem:[#allocation11 + $0x1f8] sm:$0xff]
        %v1094 = vld [vmem:[#allocation11 + $0x200] sm:$0xff]
        %v1095 = vld [vmem:[#allocation11 + $0x208] sm:$0xff]
        %v1096 = vld [vmem:[#allocation11 + $0x210] sm:$0xff]
        %v1097 = vld [vmem:[#allocation11 + $0x218] sm:$0xff]
        %v1098 = vld [vmem:[#allocation11 + $0x220] sm:$0xff]
        %v1099 = vld [vmem:[#allocation11 + $0x228] sm:$0xff]
        %v1100 = vld [vmem:[#allocation11 + $0x230] sm:$0xff]
        %v1101 = vld [vmem:[#allocation11 + $0x238] sm:$0xff]
        %v1102 = vld [vmem:[#allocation11 + $0x240] sm:$0xff]
        %v1103 = vld [vmem:[#allocation11 + $0x248] sm:$0xff]
        %v1104 = vld [vmem:[#allocation11 + $0x250] sm:$0xff]
        %v1105 = vld [vmem:[#allocation11 + $0x258] sm:$0xff]
        %v1106 = vld [vmem:[#allocation11 + $0x260] sm:$0xff]
        %v1107 = vld [vmem:[#allocation11 + $0x268] sm:$0xff]
        %v1108 = vld [vmem:[#allocation11 + $0x270] sm:$0xff]
        %v1109 = vld [vmem:[#allocation11 + $0x278] sm:$0xff]
        %1110 = vmatprep.subr.mxu0 %v1031
        %1111 = vmatpush1.msra.mxu0 %v1030
        %1112 = vmatprep.subr.mxu0 %v1036
        %1113 = vmatpush1.msra.mxu0 %v1035
        %1114 = vmatprep.subr.mxu0 %v1041
        %1115 = vmatpush1.msra.mxu0 %v1040
        %1116 = vmatprep.subr.mxu0 %v1046
        %1117 = vmatpush1.msra.mxu0 %v1045
        %1118 = vmatprep.subr.mxu0 %v1051
        %1119 = vmatpush1.msra.mxu0 %v1050
        %1120 = vmatprep.subr.mxu0 %v1056
        %1121 = vmatpush1.msra.mxu0 %v1055
        %1122 = vmatprep.subr.mxu0 %v1061
        %1123 = vmatpush1.msra.mxu0 %v1060
        %1124 = vmatprep.subr.mxu0 %v1066
        %1125 = vmatpush1.msra.mxu0 %v1065
        %1126 = vmatprep.subr.mxu0 %v1071
        %1127 = vmatpush1.msra.mxu0 %v1070
        %1128 = vmatprep.subr.mxu0 %v1076
        %1129 = vmatpush1.msra.mxu0 %v1075
        %1130 = vmatprep.subr.mxu0 %v1081
        %1131 = vmatpush1.msra.mxu0 %v1080
        %1132 = vmatprep.subr.mxu0 %v1086
        %1133 = vmatpush1.msra.mxu0 %v1085
        %1134 = vmatprep.subr.mxu0 %v1091
        %1135 = vmatpush1.msra.mxu0 %v1090
        %1136 = vmatprep.subr.mxu0 %v1096
        %1137 = vmatpush1.msra.mxu0 %v1095
        %1138 = vmatprep.subr.mxu0 %v1101
        %1139 = vmatpush1.msra.mxu0 %v1100
        %1140 = vmatprep.subr.mxu0 %v1106
        %1141 = vmatpush1.msra.mxu0 %v1105
        %1142 = vmatprep.subr.mxu0 0.0
        %1143 = vmatpush1.msra.mxu0 0.0
        %1144 = vmatprep.subr.mxu0 0.0
        %1145 = vmatpush1.msra.mxu0 0.0
        %1146 = vmatprep.subr.mxu0 0.0
        %1147 = vmatpush1.msra.mxu0 0.0
        %1148 = vmatprep.subr.mxu0 0.0
        %1149 = vmatpush1.msra.mxu0 0.0
        %1150 = vmatprep.subr.mxu0 0.0
        %1151 = vmatpush1.msra.mxu0 0.0
        %1152 = vmatprep.subr.mxu0 0.0
        %1153 = vmatpush1.msra.mxu0 0.0
        %1154 = vmatprep.subr.mxu0 0.0
        %1155 = vmatpush1.msra.mxu0 0.0
        %1156 = vmatprep.subr.mxu0 0.0
        %1157 = vmatpush1.msra.mxu0 0.0
        %1158 = vmatprep.subr.mxu0 0.0
        %1159 = vmatpush1.msra.mxu0 0.0
        %1160 = vmatprep.subr.mxu0 0.0
        %1161 = vmatpush1.msra.mxu0 0.0
        %1162 = vmatprep.subr.mxu0 0.0
        %1163 = vmatpush1.msra.mxu0 0.0
        %1164 = vmatprep.subr.mxu0 0.0
        %1165 = vmatpush1.msra.mxu0 0.0
        %1166 = vmatprep.subr.mxu0 0.0
        %1167 = vmatpush1.msra.mxu0 0.0
        %1168 = vmatprep.subr.mxu0 0.0
        %1169 = vmatpush1.msra.mxu0 0.0
        %1170 = vmatprep.subr.mxu0 0.0
        %1171 = vmatpush1.msra.mxu0 0.0
        %1172 = vmatprep.subr.mxu0 0.0
        %1173 = vmatpush1.msra.mxu0 0.0
        %1174 = vmatprep.mubr.f32.mxu0 0.0
        %1175 = vmatmul.mubr.f32.gmra.mrb[0].mxu0 %v946
        %v1176 = vpop.f32.mrb[0].mxu0
        %v1177 = vadd.f32 0.0, %v1176
        %v1178 = vpop.f32.mrb[0].mxu0
        %v1179 = vadd.f32 0.0, %v1178
        %1180 = vdwg.mxu0
        %1181 = vmatprep.subr.mxu0 %v1033
        %1182 = vmatpush1.msra.mxu0 %v1032
        %1183 = vmatprep.subr.mxu0 %v1038
        %1184 = vmatpush1.msra.mxu0 %v1037
        %1185 = vmatprep.subr.mxu0 %v1043
        %1186 = vmatpush1.msra.mxu0 %v1042
        %1187 = vmatprep.subr.mxu0 %v1048
        %1188 = vmatpush1.msra.mxu0 %v1047
        %1189 = vmatprep.subr.mxu0 %v1053
        %1190 = vmatpush1.msra.mxu0 %v1052
        %1191 = vmatprep.subr.mxu0 %v1058
        %1192 = vmatpush1.msra.mxu0 %v1057
        %1193 = vmatprep.subr.mxu0 %v1063
        %1194 = vmatpush1.msra.mxu0 %v1062
        %1195 = vmatprep.subr.mxu0 %v1068
        %1196 = vmatpush1.msra.mxu0 %v1067
        %1197 = vmatprep.subr.mxu0 %v1073
        %1198 = vmatpush1.msra.mxu0 %v1072
        %1199 = vmatprep.subr.mxu0 %v1078
        %1200 = vmatpush1.msra.mxu0 %v1077
        %1201 = vmatprep.subr.mxu0 %v1083
        %1202 = vmatpush1.msra.mxu0 %v1082
        %1203 = vmatprep.subr.mxu0 %v1088
        %1204 = vmatpush1.msra.mxu0 %v1087
        %1205 = vmatprep.subr.mxu0 %v1093
        %1206 = vmatpush1.msra.mxu0 %v1092
        %1207 = vmatprep.subr.mxu0 %v1098
        %1208 = vmatpush1.msra.mxu0 %v1097
        %1209 = vmatprep.subr.mxu0 %v1103
        %1210 = vmatpush1.msra.mxu0 %v1102
        %1211 = vmatprep.subr.mxu0 %v1108
        %1212 = vmatpush1.msra.mxu0 %v1107
        %1213 = vmatprep.subr.mxu0 0.0
        %1214 = vmatpush1.msra.mxu0 0.0
        %1215 = vmatprep.subr.mxu0 0.0
        %1216 = vmatpush1.msra.mxu0 0.0
        %1217 = vmatprep.subr.mxu0 0.0
        %1218 = vmatpush1.msra.mxu0 0.0
        %1219 = vmatprep.subr.mxu0 0.0
        %1220 = vmatpush1.msra.mxu0 0.0
        %1221 = vmatprep.subr.mxu0 0.0
        %1222 = vmatpush1.msra.mxu0 0.0
        %1223 = vmatprep.subr.mxu0 0.0
        %1224 = vmatpush1.msra.mxu0 0.0
        %1225 = vmatprep.subr.mxu0 0.0
        %1226 = vmatpush1.msra.mxu0 0.0
        %1227 = vmatprep.subr.mxu0 0.0
        %1228 = vmatpush1.msra.mxu0 0.0
        %1229 = vmatprep.subr.mxu0 0.0
        %1230 = vmatpush1.msra.mxu0 0.0
        %1231 = vmatprep.subr.mxu0 0.0
        %1232 = vmatpush1.msra.mxu0 0.0
        %1233 = vmatprep.subr.mxu0 0.0
        %1234 = vmatpush1.msra.mxu0 0.0
        %1235 = vmatprep.subr.mxu0 0.0
        %1236 = vmatpush1.msra.mxu0 0.0
        %1237 = vmatprep.subr.mxu0 0.0
        %1238 = vmatpush1.msra.mxu0 0.0
        %1239 = vmatprep.subr.mxu0 0.0
        %1240 = vmatpush1.msra.mxu0 0.0
        %1241 = vmatprep.subr.mxu0 0.0
        %1242 = vmatpush1.msra.mxu0 0.0
        %1243 = vmatprep.subr.mxu0 0.0
        %1244 = vmatpush1.msra.mxu0 0.0
        %1245 = vmatprep.mubr.f32.mxu0 0.0
        %1246 = vmatmul.mubr.f32.gmra.mrb[0].mxu0 %v946
        %v1247 = vpop.f32.mrb[0].mxu0
        %v1248 = vadd.f32 0.0, %v1247
        %v1249 = vpop.f32.mrb[0].mxu0
        %v1250 = vadd.f32 0.0, %v1249
        %1251 = vdwg.mxu0
        %1252 = vmatprep.subr.mxu0 0.0
        %1253 = vmatpush1.msra.mxu0 %v1034
        %1254 = vmatprep.subr.mxu0 0.0
        %1255 = vmatpush1.msra.mxu0 %v1039
        %1256 = vmatprep.subr.mxu0 0.0
        %1257 = vmatpush1.msra.mxu0 %v1044
        %1258 = vmatprep.subr.mxu0 0.0
        %1259 = vmatpush1.msra.mxu0 %v1049
        %1260 = vmatprep.subr.mxu0 0.0
        %1261 = vmatpush1.msra.mxu0 %v1054
        %1262 = vmatprep.subr.mxu0 0.0
        %1263 = vmatpush1.msra.mxu0 %v1059
        %1264 = vmatprep.subr.mxu0 0.0
        %1265 = vmatpush1.msra.mxu0 %v1064
        %1266 = vmatprep.subr.mxu0 0.0
        %1267 = vmatpush1.msra.mxu0 %v1069
        %1268 = vmatprep.subr.mxu0 0.0
        %1269 = vmatpush1.msra.mxu0 %v1074
        %1270 = vmatprep.subr.mxu0 0.0
        %1271 = vmatpush1.msra.mxu0 %v1079
        %1272 = vmatprep.subr.mxu0 0.0
        %1273 = vmatpush1.msra.mxu0 %v1084
        %1274 = vmatprep.subr.mxu0 0.0
        %1275 = vmatpush1.msra.mxu0 %v1089
        %1276 = vmatprep.subr.mxu0 0.0
        %1277 = vmatpush1.msra.mxu0 %v1094
        %1278 = vmatprep.subr.mxu0 0.0
        %1279 = vmatpush1.msra.mxu0 %v1099
        %1280 = vmatprep.subr.mxu0 0.0
        %1281 = vmatpush1.msra.mxu0 %v1104
        %1282 = vmatprep.subr.mxu0 0.0
        %1283 = vmatpush1.msra.mxu0 %v1109
        %1284 = vmatprep.subr.mxu0 0.0
        %1285 = vmatpush1.msra.mxu0 0.0
        %1286 = vmatprep.subr.mxu0 0.0
        %1287 = vmatpush1.msra.mxu0 0.0
        %1288 = vmatprep.subr.mxu0 0.0
        %1289 = vmatpush1.msra.mxu0 0.0
        %1290 = vmatprep.subr.mxu0 0.0
        %1291 = vmatpush1.msra.mxu0 0.0
        %1292 = vmatprep.subr.mxu0 0.0
        %1293 = vmatpush1.msra.mxu0 0.0
        %1294 = vmatprep.subr.mxu0 0.0
        %1295 = vmatpush1.msra.mxu0 0.0
        %1296 = vmatprep.subr.mxu0 0.0
        %1297 = vmatpush1.msra.mxu0 0.0
        %1298 = vmatprep.subr.mxu0 0.0
        %1299 = vmatpush1.msra.mxu0 0.0
        %1300 = vmatprep.subr.mxu0 0.0
        %1301 = vmatpush1.msra.mxu0 0.0
        %1302 = vmatprep.subr.mxu0 0.0
        %1303 = vmatpush1.msra.mxu0 0.0
        %1304 = vmatprep.subr.mxu0 0.0
        %1305 = vmatpush1.msra.mxu0 0.0
        %1306 = vmatprep.subr.mxu0 0.0
        %1307 = vmatpush1.msra.mxu0 0.0
        %1308 = vmatprep.subr.mxu0 0.0
        %1309 = vmatpush1.msra.mxu0 0.0
        %1310 = vmatprep.subr.mxu0 0.0
        %1311 = vmatpush1.msra.mxu0 0.0
        %1312 = vmatprep.subr.mxu0 0.0
        %1313 = vmatpush1.msra.mxu0 0.0
        %1314 = vmatprep.subr.mxu0 0.0
        %1315 = vmatpush1.msra.mxu0 0.0
        %1316 = vmatprep.mubr.f32.mxu0 0.0
        %1317 = vmatmul.mubr.f32.gmra.mrb[0].mxu0 %v946
        %v1318 = vpop.f32.mrb[0].mxu0
        %v1319 = vadd.f32 0.0, %v1318
        %v1320 = vpop.f32.mrb[0].mxu0
        %1321 = vdwg.mxu0
        %1322 = vmatprep.subr.mxu0 %v951
        %1323 = vmatpush1.msra.mxu0 %v950
        %1324 = vmatprep.subr.mxu0 %v956
        %1325 = vmatpush1.msra.mxu0 %v955
        %1326 = vmatprep.subr.mxu0 %v961
        %1327 = vmatpush1.msra.mxu0 %v960
        %1328 = vmatprep.subr.mxu0 %v966
        %1329 = vmatpush1.msra.mxu0 %v965
        %1330 = vmatprep.subr.mxu0 %v971
        %1331 = vmatpush1.msra.mxu0 %v970
        %1332 = vmatprep.subr.mxu0 %v976
        %1333 = vmatpush1.msra.mxu0 %v975
        %1334 = vmatprep.subr.mxu0 %v981
        %1335 = vmatpush1.msra.mxu0 %v980
        %1336 = vmatprep.subr.mxu0 %v986
        %1337 = vmatpush1.msra.mxu0 %v985
        %1338 = vmatprep.subr.mxu0 %v991
        %1339 = vmatpush1.msra.mxu0 %v990
        %1340 = vmatprep.subr.mxu0 %v996
        %1341 = vmatpush1.msra.mxu0 %v995
        %1342 = vmatprep.subr.mxu0 %v1001
        %1343 = vmatpush1.msra.mxu0 %v1000
        %1344 = vmatprep.subr.mxu0 %v1006
        %1345 = vmatpush1.msra.mxu0 %v1005
        %1346 = vmatprep.subr.mxu0 %v1011
        %1347 = vmatpush1.msra.mxu0 %v1010
        %1348 = vmatprep.subr.mxu0 %v1016
        %1349 = vmatpush1.msra.mxu0 %v1015
        %1350 = vmatprep.subr.mxu0 %v1021
        %1351 = vmatpush1.msra.mxu0 %v1020
        %1352 = vmatprep.subr.mxu0 %v1026
        %1353 = vmatpush1.msra.mxu0 %v1025
        %1354 = vmatprep.subr.mxu0 0.0
        %1355 = vmatpush1.msra.mxu0 0.0
        %1356 = vmatprep.subr.mxu0 0.0
        %1357 = vmatpush1.msra.mxu0 0.0
        %1358 = vmatprep.subr.mxu0 0.0
        %1359 = vmatpush1.msra.mxu0 0.0
        %1360 = vmatprep.subr.mxu0 0.0
        %1361 = vmatpush1.msra.mxu0 0.0
        %1362 = vmatprep.subr.mxu0 0.0
        %1363 = vmatpush1.msra.mxu0 0.0
        %1364 = vmatprep.subr.mxu0 0.0
        %1365 = vmatpush1.msra.mxu0 0.0
        %1366 = vmatprep.subr.mxu0 0.0
        %1367 = vmatpush1.msra.mxu0 0.0
        %1368 = vmatprep.subr.mxu0 0.0
        %1369 = vmatpush1.msra.mxu0 0.0
        %1370 = vmatprep.subr.mxu0 0.0
        %1371 = vmatpush1.msra.mxu0 0.0
        %1372 = vmatprep.subr.mxu0 0.0
        %1373 = vmatpush1.msra.mxu0 0.0
        %1374 = vmatprep.subr.mxu0 0.0
        %1375 = vmatpush1.msra.mxu0 0.0
        %1376 = vmatprep.subr.mxu0 0.0
        %1377 = vmatpush1.msra.mxu0 0.0
        %1378 = vmatprep.subr.mxu0 0.0
        %1379 = vmatpush1.msra.mxu0 0.0
        %1380 = vmatprep.subr.mxu0 0.0
        %1381 = vmatpush1.msra.mxu0 0.0
        %1382 = vmatprep.subr.mxu0 0.0
        %1383 = vmatpush1.msra.mxu0 0.0
        %1384 = vmatprep.subr.mxu0 0.0
        %1385 = vmatpush1.msra.mxu0 0.0
        %1386 = vmatprep.mubr.f32.mxu0 0.0
        %1387 = vmatmul.mubr.f32.gmra.mrb[0].mxu0 %v949
        %v1388 = vpop.f32.mrb[0].mxu0
        %v1389 = vadd.f32 %v1177, %v1388
        %v1390 = vpop.f32.mrb[0].mxu0
        %v1391 = vadd.f32 %v1179, %v1390
        %1392 = vdwg.mxu0
        %1393 = vmatprep.subr.mxu0 %v953
        %1394 = vmatpush1.msra.mxu0 %v952
        %1395 = vmatprep.subr.mxu0 %v958
        %1396 = vmatpush1.msra.mxu0 %v957
        %1397 = vmatprep.subr.mxu0 %v963
        %1398 = vmatpush1.msra.mxu0 %v962
        %1399 = vmatprep.subr.mxu0 %v968
        %1400 = vmatpush1.msra.mxu0 %v967
        %1401 = vmatprep.subr.mxu0 %v973
        %1402 = vmatpush1.msra.mxu0 %v972
        %1403 = vmatprep.subr.mxu0 %v978
        %1404 = vmatpush1.msra.mxu0 %v977
        %1405 = vmatprep.subr.mxu0 %v983
        %1406 = vmatpush1.msra.mxu0 %v982
        %1407 = vmatprep.subr.mxu0 %v988
        %1408 = vmatpush1.msra.mxu0 %v987
        %1409 = vmatprep.subr.mxu0 %v993
        %1410 = vmatpush1.msra.mxu0 %v992
        %1411 = vmatprep.subr.mxu0 %v998
        %1412 = vmatpush1.msra.mxu0 %v997
        %1413 = vmatprep.subr.mxu0 %v1003
        %1414 = vmatpush1.msra.mxu0 %v1002
        %1415 = vmatprep.subr.mxu0 %v1008
        %1416 = vmatpush1.msra.mxu0 %v1007
        %1417 = vmatprep.subr.mxu0 %v1013
        %1418 = vmatpush1.msra.mxu0 %v1012
        %1419 = vmatprep.subr.mxu0 %v1018
        %1420 = vmatpush1.msra.mxu0 %v1017
        %1421 = vmatprep.subr.mxu0 %v1023
        %1422 = vmatpush1.msra.mxu0 %v1022
        %1423 = vmatprep.subr.mxu0 %v1028
        %1424 = vmatpush1.msra.mxu0 %v1027
        %1425 = vmatprep.subr.mxu0 0.0
        %1426 = vmatpush1.msra.mxu0 0.0
        %1427 = vmatprep.subr.mxu0 0.0
        %1428 = vmatpush1.msra.mxu0 0.0
        %1429 = vmatprep.subr.mxu0 0.0
        %1430 = vmatpush1.msra.mxu0 0.0
        %1431 = vmatprep.subr.mxu0 0.0
        %1432 = vmatpush1.msra.mxu0 0.0
        %1433 = vmatprep.subr.mxu0 0.0
        %1434 = vmatpush1.msra.mxu0 0.0
        %1435 = vmatprep.subr.mxu0 0.0
        %1436 = vmatpush1.msra.mxu0 0.0
        %1437 = vmatprep.subr.mxu0 0.0
        %1438 = vmatpush1.msra.mxu0 0.0
        %1439 = vmatprep.subr.mxu0 0.0
        %1440 = vmatpush1.msra.mxu0 0.0
        %1441 = vmatprep.subr.mxu0 0.0
        %1442 = vmatpush1.msra.mxu0 0.0
        %1443 = vmatprep.subr.mxu0 0.0
        %1444 = vmatpush1.msra.mxu0 0.0
        %1445 = vmatprep.subr.mxu0 0.0
        %1446 = vmatpush1.msra.mxu0 0.0
        %1447 = vmatprep.subr.mxu0 0.0
        %1448 = vmatpush1.msra.mxu0 0.0
        %1449 = vmatprep.subr.mxu0 0.0
        %1450 = vmatpush1.msra.mxu0 0.0
        %1451 = vmatprep.subr.mxu0 0.0
        %1452 = vmatpush1.msra.mxu0 0.0
        %1453 = vmatprep.subr.mxu0 0.0
        %1454 = vmatpush1.msra.mxu0 0.0
        %1455 = vmatprep.subr.mxu0 0.0
        %1456 = vmatpush1.msra.mxu0 0.0
        %1457 = vmatprep.mubr.f32.mxu0 0.0
        %1458 = vmatmul.mubr.f32.gmra.mrb[0].mxu0 %v949
        %v1459 = vpop.f32.mrb[0].mxu0
        %v1460 = vadd.f32 %v1248, %v1459
        %v1461 = vpop.f32.mrb[0].mxu0
        %v1462 = vadd.f32 %v1250, %v1461
        %1463 = vdwg.mxu0
        %1464 = vmatprep.subr.mxu0 0.0
        %1465 = vmatpush1.msra.mxu0 %v954
        %1466 = vmatprep.subr.mxu0 0.0
        %1467 = vmatpush1.msra.mxu0 %v959
        %1468 = vmatprep.subr.mxu0 0.0
        %1469 = vmatpush1.msra.mxu0 %v964
        %1470 = vmatprep.subr.mxu0 0.0
        %1471 = vmatpush1.msra.mxu0 %v969
        %1472 = vmatprep.subr.mxu0 0.0
        %1473 = vmatpush1.msra.mxu0 %v974
        %1474 = vmatprep.subr.mxu0 0.0
        %1475 = vmatpush1.msra.mxu0 %v979
        %1476 = vmatprep.subr.mxu0 0.0
        %1477 = vmatpush1.msra.mxu0 %v984
        %1478 = vmatprep.subr.mxu0 0.0
        %1479 = vmatpush1.msra.mxu0 %v989
        %1480 = vmatprep.subr.mxu0 0.0
        %1481 = vmatpush1.msra.mxu0 %v994
        %1482 = vmatprep.subr.mxu0 0.0
        %1483 = vmatpush1.msra.mxu0 %v999
        %1484 = vmatprep.subr.mxu0 0.0
        %1485 = vmatpush1.msra.mxu0 %v1004
        %1486 = vmatprep.subr.mxu0 0.0
        %1487 = vmatpush1.msra.mxu0 %v1009
        %1488 = vmatprep.subr.mxu0 0.0
        %1489 = vmatpush1.msra.mxu0 %v1014
        %1490 = vmatprep.subr.mxu0 0.0
        %1491 = vmatpush1.msra.mxu0 %v1019
        %1492 = vmatprep.subr.mxu0 0.0
        %1493 = vmatpush1.msra.mxu0 %v1024
        %1494 = vmatprep.subr.mxu0 0.0
        %1495 = vmatpush1.msra.mxu0 %v1029
        %1496 = vmatprep.subr.mxu0 0.0
        %1497 = vmatpush1.msra.mxu0 0.0
        %1498 = vmatprep.subr.mxu0 0.0
        %1499 = vmatpush1.msra.mxu0 0.0
        %1500 = vmatprep.subr.mxu0 0.0
        %1501 = vmatpush1.msra.mxu0 0.0
        %1502 = vmatprep.subr.mxu0 0.0
        %1503 = vmatpush1.msra.mxu0 0.0
        %1504 = vmatprep.subr.mxu0 0.0
        %1505 = vmatpush1.msra.mxu0 0.0
        %1506 = vmatprep.subr.mxu0 0.0
        %1507 = vmatpush1.msra.mxu0 0.0
        %1508 = vmatprep.subr.mxu0 0.0
        %1509 = vmatpush1.msra.mxu0 0.0
        %1510 = vmatprep.subr.mxu0 0.0
        %1511 = vmatpush1.msra.mxu0 0.0
        %1512 = vmatprep.subr.mxu0 0.0
        %1513 = vmatpush1.msra.mxu0 0.0
        %1514 = vmatprep.subr.mxu0 0.0
        %1515 = vmatpush1.msra.mxu0 0.0
        %1516 = vmatprep.subr.mxu0 0.0
        %1517 = vmatpush1.msra.mxu0 0.0
        %1518 = vmatprep.subr.mxu0 0.0
        %1519 = vmatpush1.msra.mxu0 0.0
        %1520 = vmatprep.subr.mxu0 0.0
        %1521 = vmatpush1.msra.mxu0 0.0
        %1522 = vmatprep.subr.mxu0 0.0
        %1523 = vmatpush1.msra.mxu0 0.0
        %1524 = vmatprep.subr.mxu0 0.0
        %1525 = vmatpush1.msra.mxu0 0.0
        %1526 = vmatprep.subr.mxu0 0.0
        %1527 = vmatpush1.msra.mxu0 0.0
        %1528 = vmatprep.mubr.f32.mxu0 0.0
        %1529 = vmatmul.mubr.f32.gmra.mrb[0].mxu0 %v949
        %v1530 = vpop.f32.mrb[0].mxu0
        %v1531 = vadd.f32 %v1319, %v1530
        %v1532 = vpop.f32.mrb[0].mxu0
        %1533 = vdwg.mxu0
        %v1534 = vld [vmem:[%s7] sm:$0x1f]
        %v1536 = vlaneseq
        %v1537 = vshrl.u32 %v1536, 7
        %v1538 = vsub.s32 0, %v1537
        %v1539 = vrot.slane %v1534, %v1538
        %v1540 = vlaneseq
        %v1541 = vshrl.u32 %v1540, 7
        %v1542 = vsub.s32 1, %v1541
        %v1543 = vrot.slane %v1534, %v1542
        %v1544 = vlaneseq
        %v1545 = vshrl.u32 %v1544, 7
        %v1546 = vsub.s32 2, %v1545
        %v1547 = vrot.slane %v1534, %v1546
        %v1548 = vlaneseq
        %v1549 = vshrl.u32 %v1548, 7
        %v1550 = vsub.s32 3, %v1549
        %v1551 = vrot.slane %v1534, %v1550
        %v1552 = vlaneseq
        %v1553 = vshrl.u32 %v1552, 7
        %v1554 = vsub.s32 4, %v1553
        %v1555 = vrot.slane %v1534, %v1554
        %v1561 = vadd.f32 %v1389, %v1539
        %v1562 = vadd.f32 %v1391, %v1543
        %v1563 = vadd.f32 %v1460, %v1547
        %v1564 = vadd.f32 %v1462, %v1551
        %v1565 = vadd.f32 %v1531, %v1555
        %v1566 = vmax.f32 %v1561, 0.0
        %v1567 = vmax.f32 %v1562, 0.0
        %v1568 = vmax.f32 %v1563, 0.0
        %v1569 = vmax.f32 %v1564, 0.0
        %v1570 = vld [vmem:[#allocation13] sm:$0xff]
        %v1571 = vld [vmem:[#allocation13 + $0x8] sm:$0xff]
        %v1572 = vld [vmem:[#allocation13 + $0x10] sm:$0xff]
        %v1573 = vld [vmem:[#allocation13 + $0x18] sm:$0xff]
        %v1574 = vld [vmem:[#allocation13 + $0x20] sm:$0xff]
        %v1575 = vld [vmem:[#allocation13 + $0x28] sm:$0xff]
        %v1576 = vld [vmem:[#allocation13 + $0x30] sm:$0xff]
        %v1577 = vld [vmem:[#allocation13 + $0x38] sm:$0xff]
        %v1578 = vld [vmem:[#allocation13 + $0x40] sm:$0xff]
        %v1579 = vld [vmem:[#allocation13 + $0x48] sm:$0xff]
        %v1580 = vld [vmem:[#allocation13 + $0x50] sm:$0xff]
        %v1581 = vld [vmem:[#allocation13 + $0x58] sm:$0xff]
        %v1582 = vld [vmem:[#allocation13 + $0x60] sm:$0xff]
        %v1583 = vld [vmem:[#allocation13 + $0x68] sm:$0xff]
        %v1584 = vld [vmem:[#allocation13 + $0x70] sm:$0xff]
        %v1585 = vld [vmem:[#allocation13 + $0x78] sm:$0xff]
        %v1586 = vld [vmem:[#allocation13 + $0x80] sm:$0xff]
        %v1587 = vld [vmem:[#allocation13 + $0x88] sm:$0xff]
        %v1588 = vld [vmem:[#allocation13 + $0x90] sm:$0xff]
        %v1589 = vld [vmem:[#allocation13 + $0x98] sm:$0xff]
        %v1590 = vld [vmem:[#allocation13 + $0xa0] sm:$0xff]
        %v1591 = vld [vmem:[#allocation13 + $0xa8] sm:$0xff]
        %v1592 = vld [vmem:[#allocation13 + $0xb0] sm:$0xff]
        %v1593 = vld [vmem:[#allocation13 + $0xb8] sm:$0xff]
        %v1594 = vld [vmem:[#allocation13 + $0xc0] sm:$0xff]
        %v1595 = vld [vmem:[#allocation13 + $0xc8] sm:$0xff]
        %v1596 = vld [vmem:[#allocation13 + $0xd0] sm:$0xff]
        %v1597 = vld [vmem:[#allocation13 + $0xd8] sm:$0xff]
        %v1598 = vld [vmem:[#allocation13 + $0xe0] sm:$0xff]
        %v1599 = vld [vmem:[#allocation13 + $0xe8] sm:$0xff]
        %v1600 = vld [vmem:[#allocation13 + $0xf0] sm:$0xff]
        %v1601 = vld [vmem:[#allocation13 + $0xf8] sm:$0xff]
        %v1602 = vld [vmem:[#allocation13 + $0x100] sm:$0xff]
        %v1603 = vld [vmem:[#allocation13 + $0x108] sm:$0xff]
        %v1604 = vld [vmem:[#allocation13 + $0x110] sm:$0xff]
        %v1605 = vld [vmem:[#allocation13 + $0x118] sm:$0xff]
        %v1606 = vld [vmem:[#allocation13 + $0x120] sm:$0xff]
        %v1607 = vld [vmem:[#allocation13 + $0x128] sm:$0xff]
        %v1608 = vld [vmem:[#allocation13 + $0x130] sm:$0xff]
        %v1609 = vld [vmem:[#allocation13 + $0x138] sm:$0xff]
        %v1610 = vld [vmem:[#allocation13 + $0x140] sm:$0xff]
        %v1611 = vld [vmem:[#allocation13 + $0x148] sm:$0xff]
        %v1612 = vld [vmem:[#allocation13 + $0x150] sm:$0xff]
        %v1613 = vld [vmem:[#allocation13 + $0x158] sm:$0xff]
        %v1614 = vld [vmem:[#allocation13 + $0x160] sm:$0xff]
        %v1615 = vld [vmem:[#allocation13 + $0x168] sm:$0xff]
        %v1616 = vld [vmem:[#allocation13 + $0x170] sm:$0xff]
        %v1617 = vld [vmem:[#allocation13 + $0x178] sm:$0xff]
        %v1618 = vld [vmem:[#allocation13 + $0x180] sm:$0xff]
        %v1619 = vld [vmem:[#allocation13 + $0x188] sm:$0xff]
        %v1620 = vld [vmem:[#allocation13 + $0x190] sm:$0xff]
        %v1621 = vld [vmem:[#allocation13 + $0x198] sm:$0xff]
        %v1622 = vld [vmem:[#allocation13 + $0x1a0] sm:$0xff]
        %v1623 = vld [vmem:[#allocation13 + $0x1a8] sm:$0xff]
        %v1624 = vld [vmem:[#allocation13 + $0x1b0] sm:$0xff]
        %v1625 = vld [vmem:[#allocation13 + $0x1b8] sm:$0xff]
        %v1626 = vld [vmem:[#allocation13 + $0x1c0] sm:$0xff]
        %v1627 = vld [vmem:[#allocation13 + $0x1c8] sm:$0xff]
        %v1628 = vld [vmem:[#allocation13 + $0x1d0] sm:$0xff]
        %v1629 = vld [vmem:[#allocation13 + $0x1d8] sm:$0xff]
        %v1630 = vld [vmem:[#allocation13 + $0x1e0] sm:$0xff]
        %v1631 = vld [vmem:[#allocation13 + $0x1e8] sm:$0xff]
        %v1632 = vld [vmem:[#allocation13 + $0x1f0] sm:$0xff]
        %v1633 = vld [vmem:[#allocation13 + $0x1f8] sm:$0xff]
        %1634 = vmatprep.subr.mxu0 0.0
        %1635 = vmatpush1.msra.mxu0 %v1570
        %1636 = vmatprep.subr.mxu0 0.0
        %1637 = vmatpush1.msra.mxu0 %v1571
        %1638 = vmatprep.subr.mxu0 0.0
        %1639 = vmatpush1.msra.mxu0 %v1572
        %1640 = vmatprep.subr.mxu0 0.0
        %1641 = vmatpush1.msra.mxu0 %v1573
        %1642 = vmatprep.subr.mxu0 0.0
        %1643 = vmatpush1.msra.mxu0 %v1574
        %1644 = vmatprep.subr.mxu0 0.0
        %1645 = vmatpush1.msra.mxu0 %v1575
        %1646 = vmatprep.subr.mxu0 0.0
        %1647 = vmatpush1.msra.mxu0 %v1576
        %1648 = vmatprep.subr.mxu0 0.0
        %1649 = vmatpush1.msra.mxu0 %v1577
        %1650 = vmatprep.subr.mxu0 0.0
        %1651 = vmatpush1.msra.mxu0 %v1578
        %1652 = vmatprep.subr.mxu0 0.0
        %1653 = vmatpush1.msra.mxu0 %v1579
        %1654 = vmatprep.subr.mxu0 0.0
        %1655 = vmatpush1.msra.mxu0 %v1580
        %1656 = vmatprep.subr.mxu0 0.0
        %1657 = vmatpush1.msra.mxu0 %v1581
        %1658 = vmatprep.subr.mxu0 0.0
        %1659 = vmatpush1.msra.mxu0 %v1582
        %1660 = vmatprep.subr.mxu0 0.0
        %1661 = vmatpush1.msra.mxu0 %v1583
        %1662 = vmatprep.subr.mxu0 0.0
        %1663 = vmatpush1.msra.mxu0 %v1584
        %1664 = vmatprep.subr.mxu0 0.0
        %1665 = vmatpush1.msra.mxu0 %v1585
        %1666 = vmatprep.subr.mxu0 0.0
        %1667 = vmatpush1.msra.mxu0 %v1586
        %1668 = vmatprep.subr.mxu0 0.0
        %1669 = vmatpush1.msra.mxu0 %v1587
        %1670 = vmatprep.subr.mxu0 0.0
        %1671 = vmatpush1.msra.mxu0 %v1588
        %1672 = vmatprep.subr.mxu0 0.0
        %1673 = vmatpush1.msra.mxu0 %v1589
        %1674 = vmatprep.subr.mxu0 0.0
        %1675 = vmatpush1.msra.mxu0 %v1590
        %1676 = vmatprep.subr.mxu0 0.0
        %1677 = vmatpush1.msra.mxu0 %v1591
        %1678 = vmatprep.subr.mxu0 0.0
        %1679 = vmatpush1.msra.mxu0 %v1592
        %1680 = vmatprep.subr.mxu0 0.0
        %1681 = vmatpush1.msra.mxu0 %v1593
        %1682 = vmatprep.subr.mxu0 0.0
        %1683 = vmatpush1.msra.mxu0 %v1594
        %1684 = vmatprep.subr.mxu0 0.0
        %1685 = vmatpush1.msra.mxu0 %v1595
        %1686 = vmatprep.subr.mxu0 0.0
        %1687 = vmatpush1.msra.mxu0 %v1596
        %1688 = vmatprep.subr.mxu0 0.0
        %1689 = vmatpush1.msra.mxu0 %v1597
        %1690 = vmatprep.subr.mxu0 0.0
        %1691 = vmatpush1.msra.mxu0 %v1598
        %1692 = vmatprep.subr.mxu0 0.0
        %1693 = vmatpush1.msra.mxu0 %v1599
        %1694 = vmatprep.subr.mxu0 0.0
        %1695 = vmatpush1.msra.mxu0 %v1600
        %1696 = vmatprep.subr.mxu0 0.0
        %1697 = vmatpush1.msra.mxu0 %v1601
        %1698 = vmatprep.mubr.f32.mxu0 %v1567
        %1699 = vmatmul.mubr.f32.gmra.mrb[0].mxu0 %v1566
        %v1700 = vpop.f32.mrb[0].mxu0
        %v1701 = vadd.f32 %v1565, %v1700
        %v1702 = vpop.f32.mrb[0].mxu0
        %1703 = vdwg.mxu0
        %1704 = vmatprep.subr.mxu0 0.0
        %1705 = vmatpush1.msra.mxu0 %v1602
        %1706 = vmatprep.subr.mxu0 0.0
        %1707 = vmatpush1.msra.mxu0 %v1603
        %1708 = vmatprep.subr.mxu0 0.0
        %1709 = vmatpush1.msra.mxu0 %v1604
        %1710 = vmatprep.subr.mxu0 0.0
        %1711 = vmatpush1.msra.mxu0 %v1605
        %1712 = vmatprep.subr.mxu0 0.0
        %1713 = vmatpush1.msra.mxu0 %v1606
        %1714 = vmatprep.subr.mxu0 0.0
        %1715 = vmatpush1.msra.mxu0 %v1607
        %1716 = vmatprep.subr.mxu0 0.0
        %1717 = vmatpush1.msra.mxu0 %v1608
        %1718 = vmatprep.subr.mxu0 0.0
        %1719 = vmatpush1.msra.mxu0 %v1609
        %1720 = vmatprep.subr.mxu0 0.0
        %1721 = vmatpush1.msra.mxu0 %v1610
        %1722 = vmatprep.subr.mxu0 0.0
        %1723 = vmatpush1.msra.mxu0 %v1611
        %1724 = vmatprep.subr.mxu0 0.0
        %1725 = vmatpush1.msra.mxu0 %v1612
        %1726 = vmatprep.subr.mxu0 0.0
        %1727 = vmatpush1.msra.mxu0 %v1613
        %1728 = vmatprep.subr.mxu0 0.0
        %1729 = vmatpush1.msra.mxu0 %v1614
        %1730 = vmatprep.subr.mxu0 0.0
        %1731 = vmatpush1.msra.mxu0 %v1615
        %1732 = vmatprep.subr.mxu0 0.0
        %1733 = vmatpush1.msra.mxu0 %v1616
        %1734 = vmatprep.subr.mxu0 0.0
        %1735 = vmatpush1.msra.mxu0 %v1617
        %1736 = vmatprep.subr.mxu0 0.0
        %1737 = vmatpush1.msra.mxu0 %v1618
        %1738 = vmatprep.subr.mxu0 0.0
        %1739 = vmatpush1.msra.mxu0 %v1619
        %1740 = vmatprep.subr.mxu0 0.0
        %1741 = vmatpush1.msra.mxu0 %v1620
        %1742 = vmatprep.subr.mxu0 0.0
        %1743 = vmatpush1.msra.mxu0 %v1621
        %1744 = vmatprep.subr.mxu0 0.0
        %1745 = vmatpush1.msra.mxu0 %v1622
        %1746 = vmatprep.subr.mxu0 0.0
        %1747 = vmatpush1.msra.mxu0 %v1623
        %1748 = vmatprep.subr.mxu0 0.0
        %1749 = vmatpush1.msra.mxu0 %v1624
        %1750 = vmatprep.subr.mxu0 0.0
        %1751 = vmatpush1.msra.mxu0 %v1625
        %1752 = vmatprep.subr.mxu0 0.0
        %1753 = vmatpush1.msra.mxu0 %v1626
        %1754 = vmatprep.subr.mxu0 0.0
        %1755 = vmatpush1.msra.mxu0 %v1627
        %1756 = vmatprep.subr.mxu0 0.0
        %1757 = vmatpush1.msra.mxu0 %v1628
        %1758 = vmatprep.subr.mxu0 0.0
        %1759 = vmatpush1.msra.mxu0 %v1629
        %1760 = vmatprep.subr.mxu0 0.0
        %1761 = vmatpush1.msra.mxu0 %v1630
        %1762 = vmatprep.subr.mxu0 0.0
        %1763 = vmatpush1.msra.mxu0 %v1631
        %1764 = vmatprep.subr.mxu0 0.0
        %1765 = vmatpush1.msra.mxu0 %v1632
        %1766 = vmatprep.subr.mxu0 0.0
        %1767 = vmatpush1.msra.mxu0 %v1633
        %1768 = vmatprep.mubr.f32.mxu0 %v1569
        %1769 = vmatmul.mubr.f32.gmra.mrb[0].mxu0 %v1568
        %v1770 = vpop.f32.mrb[0].mxu0
        %v1771 = vadd.f32 %v1701, %v1770
        %v1772 = vpop.f32.mrb[0].mxu0
        %1773 = vdwg.mxu0
        %1774 = vst [vmem:[%s456] sm:$0xff] %v1771
        %s1775 = sand.u32 %s238, 1
        %s1776 = scalar_lea.sflag [#allocation4], %s1775
        %s1777 = sand.u32 %s238, 1
        %s1778 = smul.addr %s1777, 8
        %s1779 = scalar_lea.vmem [#allocation14], %s1778
        // Predicated region
        $region85: #{tpu_custom_call.1} parent=55 // pred_check
          %p1780 = pneg %p248
        $region86: #{tpu_custom_call.1} parent=55 // pred_check_branch
          %1782 = sbr.rel (%p1780) target = $region88
        $region87: #{tpu_custom_call.1} parent=55 // pred_region
          %s1784 = ssub.s32 128, 128
          %1785 = vsyncadd %s1776, %s1784
          %s1786 = smul.addr %s31, 128
          %s1787 = scalar_lea.hbm %s9, %s1786
          %s1789 = sshll.u32 %s1779, 4
          %s1790 = int_to_ptr.vmem [resolvable:$true] %s1789
          %1792 = dma.vmem_to_hbm [thread:$0]  %s1790, 128, %s1787, %s1776
        $region88: #{tpu_custom_call.1} parent=55 // pred_fallthru
          _
      $region56: #{tpu_custom_call.1} parent=5 // pred_fallthru
        _
      %p1793 = scmp.le.s32.totalorder 2, %s26
      // Predicated region
      $region89: #{tpu_custom_call.1} parent=5 // pred_check
        %p1794 = pneg %p1793
      $region90: #{tpu_custom_call.1} parent=5 // pred_check_branch
        %1796 = sbr.rel (%p1794) target = $region92
      $region91: #{tpu_custom_call.1} parent=5 // pred_region
        %s1797 = ssub.s32 %s26, 2
        // Predicated region
        $region93: #{tpu_custom_call.1} parent=91 // pred_check
          %p1798 = pneg %p254
        $region94: #{tpu_custom_call.1} parent=91 // pred_check_branch
          %1800 = sbr.rel (%p1798) target = $region96
        $region95: #{tpu_custom_call.1} parent=91 // pred_region
          %s1801 = sand.u32 %s239, 1
          %s1802 = scalar_lea.sflag [#allocation4], %s1801
          %s1803 = sand.u32 %s239, 1
          %s1804 = smul.addr %s1803, 8
          %s1805 = scalar_lea.vmem [#allocation14], %s1804
          %1806 = dma.done %s1802, 128
        $region96: #{tpu_custom_call.1} parent=91 // pred_fallthru
          _
      $region92: #{tpu_custom_call.1} parent=5 // pred_fallthru
        _
    $region6: #{tpu_custom_call.1} parent=1 // loop_footer
      %s30 = sadd.s32 1, %s26
    $region7: #{tpu_custom_call.1} parent=1 // loop_footer_branch
      %25 = sbr.rel target = $region3
    $region8: #{tpu_custom_call.1} parent=1 // loop_exit
      _
    %1807 = vsyncpa [#allocation3], 1
    %s1808 = scalar_lea.sflag [#allocation3], 1
    %1809 = vsyncpa %s1808, 1
    %1810 = vsyncpa [#allocation6], 1
    %s1811 = scalar_lea.sflag [#allocation6], 1
    %1812 = vsyncpa %s1811, 1
    %1813 = vsyncpa [#allocation9], 1
    %1814 = vsyncpa [#allocation12], 1
    %1815 = vsyncpa [#allocation4], 1
    %s1816 = scalar_lea.sflag [#allocation4], 1
    %1817 = vsyncpa %s1816, 1

</llo_original>
